<compile_context>
chip_gen: v7x
topology: tpu7x:2x2x1
jax: 0.10.0
libtpu: 0.0.40
codegen_flags: <defaults>
</compile_context>

<pallas_src>
import functools
import math

import jax
import jax.numpy as jnp
from jax.experimental import pallas as pl
from jax.experimental.pallas import tpu as pltpu


def _round_up(n, m):
    return ((n + m - 1) // m) * m


# ----------------------------------------------------------------------------
# Fused SDCN forward kernel (single invocation, everything resident in VMEM)
# ----------------------------------------------------------------------------
def _sdcn_fused_kernel(x_ref, adj_ref,
                       w1_ref, w2_ref, w3_ref, w4_ref, w5_ref,
                       d1w_ref, d1b_ref, d2w_ref, d2b_ref, d3w_ref, d3b_ref,
                       xbw_ref, xbb_ref, cl_ref, csq_ref,
                       adj_rec_ref, node_ref, pat_ref, *, ev, v):
    f32 = jnp.float32
    bf16 = jnp.bfloat16

    adj = adj_ref[...]                      # (N, N) bf16
    z = x_ref[...]                          # (N, n_input) f32
    n_rows = z.shape[0]
    n_input = z.shape[1]

    # --- GCN stack: z = relu(adj @ (z @ W)) ----------------------------------
    # bf16 operands, f32 accumulation.  Associativity is used so the N^2-scale
    # matmul runs at min(d_in, d_out) width.
    for w_ref in (w1_ref, w2_ref, w3_ref, w4_ref):
        w = w_ref[...]                      # (d_in, d_out) bf16
        z_b = z.astype(bf16)
        if w.shape[0] < w.shape[1]:
            # d_in < d_out: (adj @ z) @ W -> N^2 matmul at width d_in.
            az = jnp.dot(adj, z_b, preferred_element_type=f32)
            z = jnp.dot(az.astype(bf16), w, preferred_element_type=f32)
        else:
            # z @ W first -> N^2 matmul at width d_out.
            support = jnp.dot(z_b, w, preferred_element_type=f32)
            z = jnp.dot(adj, support.astype(bf16), preferred_element_type=f32)
        z = jnp.maximum(z, 0.0)

    # --- adj_rec = sigmoid(z @ z.T), contracting last axes (no transpose) ----
    # sigmoid(x) == 0.5*(tanh(0.5*x)+1): single EUP op per element.
    z_b = z.astype(bf16)
    gram = jax.lax.dot_general(z_b, z_b, (((1,), (1,)), ((), ())),
                               preferred_element_type=f32)            # (N, N)
    adj_rec = 0.5 * (jnp.tanh(0.5 * gram) + 1.0)
    adj_pad = adj_rec_ref.shape[1] - n_rows
    if adj_pad > 0:
        adj_rec = jnp.concatenate(
            [adj_rec, jnp.zeros((n_rows, adj_pad), f32)], axis=1)
    adj_rec_ref[...] = adj_rec.astype(adj_rec_ref.dtype)

    # --- AE decoder (run on all N rows; wrapper keeps only the ev rows) ------
    h = jnp.maximum(
        jnp.dot(z, d1w_ref[...], preferred_element_type=f32) + d1b_ref[...], 0.0)
    h = jnp.maximum(
        jnp.dot(h, d2w_ref[...], preferred_element_type=f32) + d2b_ref[...], 0.0)
    h = jnp.maximum(
        jnp.dot(h, d3w_ref[...], preferred_element_type=f32) + d3b_ref[...], 0.0)
    x_bar = jnp.dot(h, xbw_ref[...], preferred_element_type=f32) + xbb_ref[...]

    # --- node slab: z | x_bar | zero-pad  (one lane-dense store) -------------
    node_pad = node_ref.shape[1] - 2 * n_input
    node_parts = [z, x_bar]
    if node_pad > 0:
        node_parts.append(jnp.zeros((n_rows, node_pad), f32))
    node_ref[...] = jnp.concatenate(node_parts, axis=1).astype(node_ref.dtype)

    # --- gnn_5(z_p, adj, active=False, last=True) -> plain projection --------
    # TODO(synk): confirm GNNLayer's `last=True` semantics against the real source.
    z_p = z[ev:]                                                       # (P, n_input)
    logits = jnp.dot(z_p, w5_ref[...], preferred_element_type=f32)     # (P, n_z)

    # --- Student-t q, matmul form: ||p||^2 + ||c||^2 - 2 p.c ------------------
    c = cl_ref[...]                                                    # (K, n_z)
    cross = jax.lax.dot_general(logits, c, (((1,), (1,)), ((), ())),
                                preferred_element_type=f32)            # (P, K)
    p_sq = jnp.sum(logits * logits, axis=1, keepdims=True)             # (P, 1)
    dist2 = jnp.maximum(p_sq + csq_ref[...] - 2.0 * cross, 0.0)
    q = 1.0 / (1.0 + dist2 / v)
    exponent = (v + 1.0) / 2.0
    if exponent != 1.0:  # for v == 1 the power is an exact no-op -> skip it
        q = q ** exponent
    q = q / jnp.sum(q, axis=1, keepdims=True)                          # exact div

    # --- predict = softmax(logits, axis=1) ------------------------------------
    m = jnp.max(logits, axis=1, keepdims=True)
    e = jnp.exp(logits - m)
    predict = e / jnp.sum(e, axis=1, keepdims=True)                    # exact div

    # --- patient slab: q | predict | zero-pad (one lane-dense store) ---------
    pat_pad = pat_ref.shape[1] - (q.shape[1] + predict.shape[1])
    pat_parts = [q, predict]
    if pat_pad > 0:
        pat_parts.append(jnp.zeros((q.shape[0], pat_pad), f32))
    pat_ref[...] = jnp.concatenate(pat_parts, axis=1).astype(pat_ref.dtype)


# ----------------------------------------------------------------------------
# SDCN forward wrapper (glue: concat / slicing / bias reshape stays in JAX)
# ----------------------------------------------------------------------------
def sdcn_forward(params, x_event, x_visit, x_patient, adj, v=1.0):
    x = jnp.concatenate([x_event, x_visit, x_patient], axis=0)
    data_ev = jnp.concatenate([x_event, x_visit], axis=0)

    ev = x_event.shape[0] + x_visit.shape[0]
    p_num = x_patient.shape[0]
    N = x.shape[0]
    n_input = x.shape[1]
    n_z = params["gnn_5"].shape[1]
    n_clusters = params["cluster"].shape[0]

    # bf16 operands for the O(N^2) matmuls (0/1 adjacency is exact in bf16).
    adj_bf = adj.astype(jnp.bfloat16)
    gnn_bf = [params[k].astype(jnp.bfloat16)
              for k in ("gnn_1", "gnn_2", "gnn_3", "gnn_4")]

    # 1-D biases -> (1, n) rows so every kernel operand is 2-D (lane = feature)
    d1b = params["dec_1_b"].reshape(1, -1)
    d2b = params["dec_2_b"].reshape(1, -1)
    d3b = params["dec_3_b"].reshape(1, -1)
    xbb = params["x_bar_b"].reshape(1, -1)

    # ||c||^2 is a parameter-only quantity: compute once outside the kernel.
    c_sq = jnp.sum(params["cluster"] * params["cluster"], axis=1).reshape(1, -1)

    lane = 128
    adj_cols = _round_up(N, lane)
    node_cols = _round_up(2 * n_input, lane)
    pat_cols = _round_up(n_clusters + n_z, lane)

    out_shape = (
        jax.ShapeDtypeStruct((N, adj_cols), jnp.float32),    # adj_rec | pad
        jax.ShapeDtypeStruct((N, node_cols), jnp.float32),   # z | x_bar | pad
        jax.ShapeDtypeStruct((p_num, pat_cols), jnp.float32),# q | predict | pad
    )

    # Rough cost estimate so XLA schedules the fused custom call sensibly.
    e1 = params["gnn_1"].shape[1]
    e2 = params["gnn_2"].shape[1]
    e3 = params["gnn_3"].shape[1]
    d1 = params["dec_1_w"].shape[1]
    d2 = params["dec_2_w"].shape[1]
    d3 = params["dec_3_w"].shape[1]
    flops = 0
    din = n_input
    for dout in (e1, e2, e3, n_input):
        flops += 2 * N * din * dout + 2 * N * N * min(din, dout)
        din = dout
    flops += 2 * N * N * n_input                              # gram
    for a, b in ((n_input, d1), (d1, d2), (d2, d3), (d3, n_input)):
        flops += 2 * N * a * b                                # decoder
    flops += 2 * p_num * n_input * n_z                        # gnn_5
    flops += 2 * p_num * n_z * n_clusters                     # q cross term
    transcendentals = N * N + p_num * n_z
    in_bytes = (4 * x.size + 2 * adj.size
                + 2 * sum(int(p.size) for p in gnn_bf)
                + 4 * sum(int(params[k].size) for k in
                          ("gnn_5", "dec_1_w", "dec_2_w", "dec_3_w", "x_bar_w",
                           "cluster", "dec_1_b", "dec_2_b", "dec_3_b", "x_bar_b"))
                + 4 * n_clusters)
    out_bytes = 4 * (N * adj_cols + N * node_cols + p_num * pat_cols)
    cost = pl.CostEstimate(flops=int(flops),
                           transcendentals=int(transcendentals),
                           bytes_accessed=int(in_bytes + out_bytes))

    adj_rec_pad, node_slab, pat_slab = pl.pallas_call(
        functools.partial(_sdcn_fused_kernel, ev=ev, v=float(v)),
        out_shape=out_shape,
        compiler_params=pltpu.CompilerParams(vmem_limit_bytes=32 * 1024 * 1024),
        cost_estimate=cost,
    )(x, adj_bf, *gnn_bf, params["gnn_5"],
      params["dec_1_w"], d1b, params["dec_2_w"], d2b, params["dec_3_w"], d3b,
      params["x_bar_w"], xbb, params["cluster"], c_sq)

    # Free XLA slices back to the module's natural output shapes.
    adj_rec = adj_rec_pad[:, :N]
    z = node_slab[:, :n_input]
    x_bar = node_slab[:ev, n_input:2 * n_input]
    z_s = z[:ev]
    z_p = z[ev:]
    q = pat_slab[:, :n_clusters]
    predict = pat_slab[:, n_clusters:n_clusters + n_z]

    return data_ev, adj, adj_rec, z_s, z_p, x_bar, q, predict


# ----------------------------------------------------------------------------
# Deterministic parameter construction (stand-in for torch init / torch.load)
# ----------------------------------------------------------------------------
def xavier_uniform(key, shape):
    fan_in, fan_out = shape
    limit = (6.0 / (fan_in + fan_out)) ** 0.5
    return jax.random.uniform(key, shape, jnp.float32, -limit, limit)


def xavier_normal(key, shape):
    fan_out, fan_in = shape  # torch treats (n_clusters, n_z) as (out, in)
    std = (2.0 / (fan_in + fan_out)) ** 0.5
    return std * jax.random.normal(key, shape, jnp.float32)


def linear_bias(key, fan_in, fan_out):
    bound = 1.0 / (fan_in ** 0.5)
    return jax.random.uniform(key, (fan_out,), jnp.float32, -bound, bound)


def make_params(key, n_enc_1, n_enc_2, n_enc_3, n_dec_1, n_dec_2, n_dec_3,
                n_input, n_z, n_clusters):
    keys = jax.random.split(key, 16)
    return {
        "gnn_1": xavier_uniform(keys[0], (n_input, n_enc_1)),
        "gnn_2": xavier_uniform(keys[1], (n_enc_1, n_enc_2)),
        "gnn_3": xavier_uniform(keys[2], (n_enc_2, n_enc_3)),
        "gnn_4": xavier_uniform(keys[3], (n_enc_3, n_input)),
        "gnn_5": xavier_uniform(keys[4], (n_input, n_z)),
        "dec_1_w": xavier_uniform(keys[5], (n_input, n_dec_1)),
        "dec_1_b": linear_bias(keys[6], n_input, n_dec_1),
        "dec_2_w": xavier_uniform(keys[7], (n_dec_1, n_dec_2)),
        "dec_2_b": linear_bias(keys[8], n_dec_1, n_dec_2),
        "dec_3_w": xavier_uniform(keys[9], (n_dec_2, n_dec_3)),
        "dec_3_b": linear_bias(keys[10], n_dec_2, n_dec_3),
        "x_bar_w": xavier_uniform(keys[11], (n_dec_3, n_input)),
        "x_bar_b": linear_bias(keys[12], n_dec_3, n_input),
        "cluster": xavier_normal(keys[13], (n_clusters, n_z)),
    }


# ----------------------------------------------------------------------------
# Main
# ----------------------------------------------------------------------------
if __name__ == "__main__":
    # Small, forward-consistent shapes (n_z == n_clusters == 10 as in the spec).
    event_num, visit_num, patient_num = 8, 8, 8
    n_input = 32
    n_enc_1, n_enc_2, n_enc_3 = 32, 32, 16
    n_dec_1, n_dec_2, n_dec_3 = 16, 32, 32
    n_z = 10
    n_clusters = 10
    v = 1.0

    key = jax.random.PRNGKey(0)
    k_par, k_ev, k_vi, k_pa, k_adj = jax.random.split(key, 5)

    params = make_params(k_par, n_enc_1, n_enc_2, n_enc_3,
                         n_dec_1, n_dec_2, n_dec_3, n_input, n_z, n_clusters)

    x_event = jax.random.normal(k_ev, (event_num, n_input), jnp.float32)
    x_visit = jax.random.normal(k_vi, (visit_num, n_input), jnp.float32)
    x_patient = jax.random.normal(k_pa, (patient_num, n_input), jnp.float32)

    N = event_num + visit_num + patient_num
    # Dense binary adjacency (stand-in for the sparse COO of ones in torch).
    adj = (jax.random.uniform(k_adj, (N, N)) < 0.2).astype(jnp.float32)
    adj = jnp.maximum(adj, adj.T)
    adj = jnp.maximum(adj, jnp.eye(N, dtype=jnp.float32))

    outs = sdcn_forward(params, x_event, x_visit, x_patient, adj, v=v)
    jax.block_until_ready(outs)

    data_ev, adj_out, adj_rec, z_s, z_p, x_bar, q, predict = outs
    assert data_ev.shape == (event_num + visit_num, n_input)
    assert adj_rec.shape == (N, N)
    assert z_s.shape == (event_num + visit_num, n_input)
    assert z_p.shape == (patient_num, n_input)
    assert x_bar.shape == (event_num + visit_num, n_input)
    assert q.shape == (patient_num, n_clusters)
    assert predict.shape == (patient_num, n_z)
    assert bool(jnp.all(jnp.isfinite(q))) and bool(jnp.all(jnp.isfinite(predict)))

    print("KERNEL_OK")
</pallas_src>

<mosaic_0001>
module attributes {stable_mosaic.version = 11 : i64} {
  func.func @_sdcn_fused_kernel(%arg0: memref<24x32xf32, #tpu.memory_space<vmem>>, %arg1: memref<24x24xbf16, #tpu.memory_space<vmem>>, %arg2: memref<32x32xbf16, #tpu.memory_space<vmem>>, %arg3: memref<32x32xbf16, #tpu.memory_space<vmem>>, %arg4: memref<32x16xbf16, #tpu.memory_space<vmem>>, %arg5: memref<16x32xbf16, #tpu.memory_space<vmem>>, %arg6: memref<32x10xf32, #tpu.memory_space<vmem>>, %arg7: memref<32x16xf32, #tpu.memory_space<vmem>>, %arg8: memref<1x16xf32, #tpu.memory_space<vmem>>, %arg9: memref<16x32xf32, #tpu.memory_space<vmem>>, %arg10: memref<1x32xf32, #tpu.memory_space<vmem>>, %arg11: memref<32x32xf32, #tpu.memory_space<vmem>>, %arg12: memref<1x32xf32, #tpu.memory_space<vmem>>, %arg13: memref<32x32xf32, #tpu.memory_space<vmem>>, %arg14: memref<1x32xf32, #tpu.memory_space<vmem>>, %arg15: memref<10x10xf32, #tpu.memory_space<vmem>>, %arg16: memref<1x10xf32, #tpu.memory_space<vmem>>, %arg17: memref<24x128xf32, #tpu.memory_space<vmem>>, %arg18: memref<24x128xf32, #tpu.memory_space<vmem>>, %arg19: memref<8x128xf32, #tpu.memory_space<vmem>>) attributes {dimension_semantics = [], scalar_prefetch = 0 : i64, scratch_operands = 0 : i64, tpu.core_type = #tpu.core_type<tc>} {
    %c0 = arith.constant 0 : index
    %c0_0 = arith.constant 0 : index
    %0 = vector.load %arg1[%c0, %c0_0] : memref<24x24xbf16, #tpu.memory_space<vmem>>, vector<24x24xbf16>
    %c0_1 = arith.constant 0 : index
    %c0_2 = arith.constant 0 : index
    %1 = vector.load %arg0[%c0_1, %c0_2] : memref<24x32xf32, #tpu.memory_space<vmem>>, vector<24x32xf32>
    %c0_3 = arith.constant 0 : index
    %c0_4 = arith.constant 0 : index
    %2 = vector.load %arg2[%c0_3, %c0_4] : memref<32x32xbf16, #tpu.memory_space<vmem>>, vector<32x32xbf16>
    %3 = arith.truncf %1 : vector<24x32xf32> to vector<24x32xbf16>
    %cst = arith.constant dense<0.000000e+00> : vector<24x32xf32>
    %4 = tpu.matmul %3, %2, %cst {dimension_numbers = #tpu.dot_dimension_numbers<[1], [0], [0], [1], [0, 0, 1, 1], [], []>} : vector<24x32xbf16>, vector<32x32xbf16>, vector<24x32xf32> -> vector<24x32xf32>
    %5 = arith.truncf %4 : vector<24x32xf32> to vector<24x32xbf16>
    %cst_5 = arith.constant dense<0.000000e+00> : vector<24x32xf32>
    %6 = tpu.matmul %0, %5, %cst_5 {dimension_numbers = #tpu.dot_dimension_numbers<[1], [0], [0], [1], [0, 0, 1, 1], [], []>} : vector<24x24xbf16>, vector<24x32xbf16>, vector<24x32xf32> -> vector<24x32xf32>
    %cst_6 = arith.constant 0.000000e+00 : f32
    %7 = vector.broadcast %cst_6 : f32 to vector<24x32xf32>
    %8 = arith.maximumf %6, %7 : vector<24x32xf32>
    %c0_7 = arith.constant 0 : index
    %c0_8 = arith.constant 0 : index
    %9 = vector.load %arg3[%c0_7, %c0_8] : memref<32x32xbf16, #tpu.memory_space<vmem>>, vector<32x32xbf16>
    %10 = arith.truncf %8 : vector<24x32xf32> to vector<24x32xbf16>
    %cst_9 = arith.constant dense<0.000000e+00> : vector<24x32xf32>
    %11 = tpu.matmul %10, %9, %cst_9 {dimension_numbers = #tpu.dot_dimension_numbers<[1], [0], [0], [1], [0, 0, 1, 1], [], []>} : vector<24x32xbf16>, vector<32x32xbf16>, vector<24x32xf32> -> vector<24x32xf32>
    %12 = arith.truncf %11 : vector<24x32xf32> to vector<24x32xbf16>
    %cst_10 = arith.constant dense<0.000000e+00> : vector<24x32xf32>
    %13 = tpu.matmul %0, %12, %cst_10 {dimension_numbers = #tpu.dot_dimension_numbers<[1], [0], [0], [1], [0, 0, 1, 1], [], []>} : vector<24x24xbf16>, vector<24x32xbf16>, vector<24x32xf32> -> vector<24x32xf32>
    %cst_11 = arith.constant 0.000000e+00 : f32
    %14 = vector.broadcast %cst_11 : f32 to vector<24x32xf32>
    %15 = arith.maximumf %13, %14 : vector<24x32xf32>
    %c0_12 = arith.constant 0 : index
    %c0_13 = arith.constant 0 : index
    %16 = vector.load %arg4[%c0_12, %c0_13] : memref<32x16xbf16, #tpu.memory_space<vmem>>, vector<32x16xbf16>
    %17 = arith.truncf %15 : vector<24x32xf32> to vector<24x32xbf16>
    %cst_14 = arith.constant dense<0.000000e+00> : vector<24x16xf32>
    %18 = tpu.matmul %17, %16, %cst_14 {dimension_numbers = #tpu.dot_dimension_numbers<[1], [0], [0], [1], [0, 0, 1, 1], [], []>} : vector<24x32xbf16>, vector<32x16xbf16>, vector<24x16xf32> -> vector<24x16xf32>
    %19 = arith.truncf %18 : vector<24x16xf32> to vector<24x16xbf16>
    %cst_15 = arith.constant dense<0.000000e+00> : vector<24x16xf32>
    %20 = tpu.matmul %0, %19, %cst_15 {dimension_numbers = #tpu.dot_dimension_numbers<[1], [0], [0], [1], [0, 0, 1, 1], [], []>} : vector<24x24xbf16>, vector<24x16xbf16>, vector<24x16xf32> -> vector<24x16xf32>
    %cst_16 = arith.constant 0.000000e+00 : f32
    %21 = vector.broadcast %cst_16 : f32 to vector<24x16xf32>
    %22 = arith.maximumf %20, %21 : vector<24x16xf32>
    %c0_17 = arith.constant 0 : index
    %c0_18 = arith.constant 0 : index
    %23 = vector.load %arg5[%c0_17, %c0_18] : memref<16x32xbf16, #tpu.memory_space<vmem>>, vector<16x32xbf16>
    %24 = arith.truncf %22 : vector<24x16xf32> to vector<24x16xbf16>
    %cst_19 = arith.constant dense<0.000000e+00> : vector<24x16xf32>
    %25 = tpu.matmul %0, %24, %cst_19 {dimension_numbers = #tpu.dot_dimension_numbers<[1], [0], [0], [1], [0, 0, 1, 1], [], []>} : vector<24x24xbf16>, vector<24x16xbf16>, vector<24x16xf32> -> vector<24x16xf32>
    %26 = arith.truncf %25 : vector<24x16xf32> to vector<24x16xbf16>
    %cst_20 = arith.constant dense<0.000000e+00> : vector<24x32xf32>
    %27 = tpu.matmul %26, %23, %cst_20 {dimension_numbers = #tpu.dot_dimension_numbers<[1], [0], [0], [1], [0, 0, 1, 1], [], []>} : vector<24x16xbf16>, vector<16x32xbf16>, vector<24x32xf32> -> vector<24x32xf32>
    %cst_21 = arith.constant 0.000000e+00 : f32
    %28 = vector.broadcast %cst_21 : f32 to vector<24x32xf32>
    %29 = arith.maximumf %27, %28 : vector<24x32xf32>
    %30 = arith.truncf %29 : vector<24x32xf32> to vector<24x32xbf16>
    %cst_22 = arith.constant dense<0.000000e+00> : vector<24x24xf32>
    %31 = tpu.matmul %30, %30, %cst_22 {dimension_numbers = #tpu.dot_dimension_numbers<[1], [1], [0], [0], [0, 0, 1, 0], [], []>} : vector<24x32xbf16>, vector<24x32xbf16>, vector<24x24xf32> -> vector<24x24xf32>
    %cst_23 = arith.constant 5.000000e-01 : f32
    %32 = vector.broadcast %cst_23 : f32 to vector<24x24xf32>
    %33 = arith.mulf %32, %31 : vector<24x24xf32>
    %34 = math.tanh %33 : vector<24x24xf32>
    %cst_24 = arith.constant 1.000000e+00 : f32
    %35 = vector.broadcast %cst_24 : f32 to vector<24x24xf32>
    %36 = arith.addf %34, %35 : vector<24x24xf32>
    %cst_25 = arith.constant 5.000000e-01 : f32
    %37 = vector.broadcast %cst_25 : f32 to vector<24x24xf32>
    %38 = arith.mulf %37, %36 : vector<24x24xf32>
    %cst_26 = arith.constant 0.000000e+00 : f32
    %39 = vector.broadcast %cst_26 : f32 to vector<24x104xf32>
    %40 = tpu.concatenate %38, %39 in 1 : vector<24x24xf32>, vector<24x104xf32> -> vector<24x128xf32>
    %c0_27 = arith.constant 0 : index
    %c0_28 = arith.constant 0 : index
    %41 = vector.load %arg17[%c0_27, %c0_28] : memref<24x128xf32, #tpu.memory_space<vmem>>, vector<24x128xf32>
    tpu.vector_store %arg17[%c0_27, %c0_28], %40 {strides = array<i32>} : memref<24x128xf32, #tpu.memory_space<vmem>>, vector<24x128xf32>,
    %c0_29 = arith.constant 0 : index
    %c0_30 = arith.constant 0 : index
    %42 = vector.load %arg7[%c0_29, %c0_30] : memref<32x16xf32, #tpu.memory_space<vmem>>, vector<32x16xf32>
    %cst_31 = arith.constant dense<0.000000e+00> : vector<24x16xf32>
    %43 = tpu.matmul %29, %42, %cst_31 {dimension_numbers = #tpu.dot_dimension_numbers<[1], [0], [0], [1], [0, 0, 1, 1], [], []>} : vector<24x32xf32>, vector<32x16xf32>, vector<24x16xf32> -> vector<24x16xf32>
    %c0_32 = arith.constant 0 : index
    %c0_33 = arith.constant 0 : index
    %44 = vector.load %arg8[%c0_32, %c0_33] : memref<1x16xf32, #tpu.memory_space<vmem>>, vector<1x16xf32>
    %45 = vector.broadcast %44 : vector<1x16xf32> to vector<24x16xf32>
    %46 = arith.addf %43, %45 : vector<24x16xf32>
    %cst_34 = arith.constant 0.000000e+00 : f32
    %47 = vector.broadcast %cst_34 : f32 to vector<24x16xf32>
    %48 = arith.maximumf %46, %47 : vector<24x16xf32>
    %c0_35 = arith.constant 0 : index
    %c0_36 = arith.constant 0 : index
    %49 = vector.load %arg9[%c0_35, %c0_36] : memref<16x32xf32, #tpu.memory_space<vmem>>, vector<16x32xf32>
    %cst_37 = arith.constant dense<0.000000e+00> : vector<24x32xf32>
    %50 = tpu.matmul %48, %49, %cst_37 {dimension_numbers = #tpu.dot_dimension_numbers<[1], [0], [0], [1], [0, 0, 1, 1], [], []>} : vector<24x16xf32>, vector<16x32xf32>, vector<24x32xf32> -> vector<24x32xf32>
    %c0_38 = arith.constant 0 : index
    %c0_39 = arith.constant 0 : index
    %51 = vector.load %arg10[%c0_38, %c0_39] : memref<1x32xf32, #tpu.memory_space<vmem>>, vector<1x32xf32>
    %52 = vector.broadcast %51 : vector<1x32xf32> to vector<24x32xf32>
    %53 = arith.addf %50, %52 : vector<24x32xf32>
    %cst_40 = arith.constant 0.000000e+00 : f32
    %54 = vector.broadcast %cst_40 : f32 to vector<24x32xf32>
    %55 = arith.maximumf %53, %54 : vector<24x32xf32>
    %c0_41 = arith.constant 0 : index
    %c0_42 = arith.constant 0 : index
    %56 = vector.load %arg11[%c0_41, %c0_42] : memref<32x32xf32, #tpu.memory_space<vmem>>, vector<32x32xf32>
    %cst_43 = arith.constant dense<0.000000e+00> : vector<24x32xf32>
    %57 = tpu.matmul %55, %56, %cst_43 {dimension_numbers = #tpu.dot_dimension_numbers<[1], [0], [0], [1], [0, 0, 1, 1], [], []>} : vector<24x32xf32>, vector<32x32xf32>, vector<24x32xf32> -> vector<24x32xf32>
    %c0_44 = arith.constant 0 : index
    %c0_45 = arith.constant 0 : index
    %58 = vector.load %arg12[%c0_44, %c0_45] : memref<1x32xf32, #tpu.memory_space<vmem>>, vector<1x32xf32>
    %59 = vector.broadcast %58 : vector<1x32xf32> to vector<24x32xf32>
    %60 = arith.addf %57, %59 : vector<24x32xf32>
    %cst_46 = arith.constant 0.000000e+00 : f32
    %61 = vector.broadcast %cst_46 : f32 to vector<24x32xf32>
    %62 = arith.maximumf %60, %61 : vector<24x32xf32>
    %c0_47 = arith.constant 0 : index
    %c0_48 = arith.constant 0 : index
    %63 = vector.load %arg13[%c0_47, %c0_48] : memref<32x32xf32, #tpu.memory_space<vmem>>, vector<32x32xf32>
    %cst_49 = arith.constant dense<0.000000e+00> : vector<24x32xf32>
    %64 = tpu.matmul %62, %63, %cst_49 {dimension_numbers = #tpu.dot_dimension_numbers<[1], [0], [0], [1], [0, 0, 1, 1], [], []>} : vector<24x32xf32>, vector<32x32xf32>, vector<24x32xf32> -> vector<24x32xf32>
    %c0_50 = arith.constant 0 : index
    %c0_51 = arith.constant 0 : index
    %65 = vector.load %arg14[%c0_50, %c0_51] : memref<1x32xf32, #tpu.memory_space<vmem>>, vector<1x32xf32>
    %66 = vector.broadcast %65 : vector<1x32xf32> to vector<24x32xf32>
    %67 = arith.addf %64, %66 : vector<24x32xf32>
    %cst_52 = arith.constant 0.000000e+00 : f32
    %68 = vector.broadcast %cst_52 : f32 to vector<24x64xf32>
    %69 = tpu.concatenate %29, %67, %68 in 1 : vector<24x32xf32>, vector<24x32xf32>, vector<24x64xf32> -> vector<24x128xf32>
    %c0_53 = arith.constant 0 : index
    %c0_54 = arith.constant 0 : index
    %70 = vector.load %arg18[%c0_53, %c0_54] : memref<24x128xf32, #tpu.memory_space<vmem>>, vector<24x128xf32>
    tpu.vector_store %arg18[%c0_53, %c0_54], %69 {strides = array<i32>} : memref<24x128xf32, #tpu.memory_space<vmem>>, vector<24x128xf32>,
    %71 = vector.extract_strided_slice %29 {offsets = [16, 0], sizes = [8, 32], strides = [1, 1]} : vector<24x32xf32> to vector<8x32xf32>
    %c0_55 = arith.constant 0 : index
    %c0_56 = arith.constant 0 : index
    %72 = vector.load %arg6[%c0_55, %c0_56] : memref<32x10xf32, #tpu.memory_space<vmem>>, vector<32x10xf32>
    %cst_57 = arith.constant dense<0.000000e+00> : vector<8x10xf32>
    %73 = tpu.matmul %71, %72, %cst_57 {dimension_numbers = #tpu.dot_dimension_numbers<[1], [0], [0], [1], [0, 0, 1, 1], [], []>} : vector<8x32xf32>, vector<32x10xf32>, vector<8x10xf32> -> vector<8x10xf32>
    %c0_58 = arith.constant 0 : index
    %c0_59 = arith.constant 0 : index
    %74 = vector.load %arg15[%c0_58, %c0_59] : memref<10x10xf32, #tpu.memory_space<vmem>>, vector<10x10xf32>
    %cst_60 = arith.constant dense<0.000000e+00> : vector<8x10xf32>
    %75 = tpu.matmul %73, %74, %cst_60 {dimension_numbers = #tpu.dot_dimension_numbers<[1], [1], [0], [0], [0, 0, 1, 0], [], []>} : vector<8x10xf32>, vector<10x10xf32>, vector<8x10xf32> -> vector<8x10xf32>
    %76 = arith.mulf %73, %73 : vector<8x10xf32>
    %cst_61 = arith.constant dense<0.000000e+00> : vector<8xf32>
    %77 = vector.multi_reduction <add>, %76, %cst_61 [1] : vector<8x10xf32> to vector<8xf32>
    %78 = vector.shape_cast %77 : vector<8xf32> to vector<8x1xf32>
    %c0_62 = arith.constant 0 : index
    %c0_63 = arith.constant 0 : index
    %79 = vector.load %arg16[%c0_62, %c0_63] : memref<1x10xf32, #tpu.memory_space<vmem>>, vector<1x10xf32>
    %80 = vector.broadcast %78 : vector<8x1xf32> to vector<8x10xf32>
    %81 = vector.broadcast %79 : vector<1x10xf32> to vector<8x10xf32>
    %82 = arith.addf %80, %81 : vector<8x10xf32>
    %cst_64 = arith.constant 2.000000e+00 : f32
    %83 = vector.broadcast %cst_64 : f32 to vector<8x10xf32>
    %84 = arith.mulf %83, %75 : vector<8x10xf32>
    %85 = arith.subf %82, %84 : vector<8x10xf32>
    %cst_65 = arith.constant 0.000000e+00 : f32
    %86 = vector.broadcast %cst_65 : f32 to vector<8x10xf32>
    %87 = arith.maximumf %85, %86 : vector<8x10xf32>
    %cst_66 = arith.constant 1.000000e+00 : f32
    %88 = vector.broadcast %cst_66 : f32 to vector<8x10xf32>
    %89 = arith.divf %87, %88 : vector<8x10xf32>
    %cst_67 = arith.constant 1.000000e+00 : f32
    %90 = vector.broadcast %cst_67 : f32 to vector<8x10xf32>
    %91 = arith.addf %90, %89 : vector<8x10xf32>
    %cst_68 = arith.constant 1.000000e+00 : f32
    %92 = vector.broadcast %cst_68 : f32 to vector<8x10xf32>
    %93 = arith.divf %92, %91 : vector<8x10xf32>
    %cst_69 = arith.constant dense<0.000000e+00> : vector<8xf32>
    %94 = vector.multi_reduction <add>, %93, %cst_69 [1] : vector<8x10xf32> to vector<8xf32>
    %95 = vector.shape_cast %94 : vector<8xf32> to vector<8x1xf32>
    %96 = vector.broadcast %95 : vector<8x1xf32> to vector<8x10xf32>
    %97 = arith.divf %93, %96 : vector<8x10xf32>
    %cst_70 = arith.constant dense<0xFF800000> : vector<8xf32>
    %98 = vector.multi_reduction <maximumf>, %73, %cst_70 [1] : vector<8x10xf32> to vector<8xf32>
    %99 = vector.shape_cast %98 : vector<8xf32> to vector<8x1xf32>
    %100 = vector.broadcast %99 : vector<8x1xf32> to vector<8x10xf32>
    %101 = arith.subf %73, %100 : vector<8x10xf32>
    %102 = math.exp %101 : vector<8x10xf32>
    %cst_71 = arith.constant dense<0.000000e+00> : vector<8xf32>
    %103 = vector.multi_reduction <add>, %102, %cst_71 [1] : vector<8x10xf32> to vector<8xf32>
    %104 = vector.shape_cast %103 : vector<8xf32> to vector<8x1xf32>
    %105 = vector.broadcast %104 : vector<8x1xf32> to vector<8x10xf32>
    %106 = arith.divf %102, %105 : vector<8x10xf32>
    %cst_72 = arith.constant 0.000000e+00 : f32
    %107 = vector.broadcast %cst_72 : f32 to vector<8x108xf32>
    %108 = tpu.concatenate %97, %106, %107 in 1 : vector<8x10xf32>, vector<8x10xf32>, vector<8x108xf32> -> vector<8x128xf32>
    %c0_73 = arith.constant 0 : index
    %c0_74 = arith.constant 0 : index
    %109 = vector.load %arg19[%c0_73, %c0_74] : memref<8x128xf32, #tpu.memory_space<vmem>>, vector<8x128xf32>
    tpu.vector_store %arg19[%c0_73, %c0_74], %108 {strides = array<i32>} : memref<8x128xf32, #tpu.memory_space<vmem>>, vector<8x128xf32>,
    return
  }
}

</mosaic_0001>

<llo_original>
// kernel: tpu_custom_call.1
$region0: #{tpu_custom_call.1}
  #allocation0 [shape = 'u32[]', space=smem, size = 0x4, offset = 0x4, fixed_abs, tag = 'smem constant byte address 0x4 - core index']
  #allocation1 [shape = 'u32[144,128]{1,0:T(1,128)}', space=vmem, size = 0x12000, scoped, tag = 'internal scratch']
  %s0 = inlined_call_operand.vmem [shape: f32[24,32], index: 0, kind: input, shape index: {}]
  %s1 = inlined_call_operand.hbm [shape: bf16[24,24], index: 1, kind: input, shape index: {}]
  %s2 = inlined_call_operand.hbm [shape: bf16[32,32], index: 2, kind: input, shape index: {}]
  %s3 = inlined_call_operand.hbm [shape: bf16[32,32], index: 3, kind: input, shape index: {}]
  %s4 = inlined_call_operand.vmem [shape: bf16[32,16], index: 4, kind: input, shape index: {}]
  %s5 = inlined_call_operand.hbm [shape: bf16[16,32], index: 5, kind: input, shape index: {}]
  %s6 = inlined_call_operand.vmem [shape: f32[32,10], index: 6, kind: input, shape index: {}]
  %s7 = inlined_call_operand.vmem [shape: f32[32,16], index: 7, kind: input, shape index: {}]
  %s8 = inlined_call_operand.vmem [shape: f32[1,16], index: 8, kind: input, shape index: {}]
  %s9 = inlined_call_operand.vmem [shape: f32[16,32], index: 9, kind: input, shape index: {}]
  %s10 = inlined_call_operand.vmem [shape: f32[1,32], index: 10, kind: input, shape index: {}]
  %s11 = inlined_call_operand.vmem [shape: f32[32,32], index: 11, kind: input, shape index: {}]
  %s12 = inlined_call_operand.vmem [shape: f32[1,32], index: 12, kind: input, shape index: {}]
  %s13 = inlined_call_operand.vmem [shape: f32[32,32], index: 13, kind: input, shape index: {}]
  %s14 = inlined_call_operand.vmem [shape: f32[1,32], index: 14, kind: input, shape index: {}]
  %s15 = inlined_call_operand.vmem [shape: f32[10,10], index: 15, kind: input, shape index: {}]
  %s16 = inlined_call_operand.vmem [shape: f32[1,10], index: 16, kind: input, shape index: {}]
  %s17 = inlined_call_operand.hbm [shape: f32[24,128], index: 17, kind: output, shape index: {0}]
  %s18 = inlined_call_operand.hbm [shape: f32[24,128], index: 18, kind: output, shape index: {1}]
  %s19 = inlined_call_operand.hbm [shape: f32[8,128], index: 19, kind: output, shape index: {2}]
  %20 = xla_tuple %s17, %s18, %s19
  %s21 = sld [smem:[#allocation0]]
  $region110: #{tpu_custom_call.1} parent=0
    _
  %s23 = ssub.s32 1, %s21
  %s24 = scalar_select 0, %s23, %s21
  $region1: #{tpu_custom_call.1} parent=0
    #allocation2 [shape = 'u8[6144]{0}', space=vmem, size = 0x1800, scoped, tag = 'input window, operand 1, single buffered']
    #allocation3 [shape = 's32[1]{0}', space=sflag, size = 0x4, scoped, tag = 'scoped memory for tpu_custom_call.1']
    #allocation4 [shape = 's32[1]{0}', space=sflag, size = 0x4, scoped, tag = 'scoped memory for tpu_custom_call.1']
    #allocation5 [shape = 'u8[8192]{0}', space=vmem, size = 0x2000, scoped, tag = 'input window, operand 2, single buffered']
    #allocation6 [shape = 's32[1]{0}', space=sflag, size = 0x4, scoped, tag = 'scoped memory for tpu_custom_call.1']
    #allocation7 [shape = 'u8[8192]{0}', space=vmem, size = 0x2000, scoped, tag = 'input window, operand 3, single buffered']
    #allocation8 [shape = 'u8[4096]{0}', space=vmem, size = 0x1000, scoped, tag = 'input window, operand 5, single buffered']
    #allocation9 [shape = 's32[1]{0}', space=sflag, size = 0x4, scoped, tag = 'scoped memory for tpu_custom_call.1']
    #allocation10 [shape = 'u8[12288]{0}', space=vmem, size = 0x3000, scoped, tag = 'output window, operand 0, single buffered']
    #allocation11 [shape = 'u8[12288]{0}', space=vmem, size = 0x3000, scoped, tag = 'output window, operand 1, single buffered']
    #allocation12 [shape = 's32[1]{0}', space=sflag, size = 0x4, scoped, tag = 'scoped memory for tpu_custom_call.1']
    #allocation13 [shape = 'u8[4096]{0}', space=vmem, size = 0x1000, scoped, tag = 'output window, operand 2, single buffered']
    %25 = vsyncpa [#allocation3], 0
    %26 = vsyncpa [#allocation6], 0
    %27 = vsyncpa [#allocation9], 0
    %28 = vsyncpa [#allocation4], 0
    %29 = vsyncpa [#allocation12], 0
    // Predicated region
    $region2: #{tpu_custom_call.1} parent=1 // pred_check
      _
    $region3: #{tpu_custom_call.1} parent=1 // pred_check_branch
      %31 = sbr.rel (0) target = $region5
    $region4: #{tpu_custom_call.1} parent=1 // pred_region
      _
    $region5: #{tpu_custom_call.1} parent=1 // pred_fallthru
      _
    // Predicated region
    $region6: #{tpu_custom_call.1} parent=1 // pred_check
      _
    $region7: #{tpu_custom_call.1} parent=1 // pred_check_branch
      %33 = sbr.rel (0) target = $region9
    $region8: #{tpu_custom_call.1} parent=1 // pred_region
      %s35 = ssub.s32 192, 192
      %36 = vsyncadd [#allocation3], %s35
      %s37 = sshll.u32 [#allocation2], 4
      %s38 = int_to_ptr.vmem [resolvable:$true] %s37
      %43 = dma.hbm_to_vmem [thread:$0]  %s1, 192, %s38, [#allocation3], 64, 64, 4
    $region9: #{tpu_custom_call.1} parent=1 // pred_fallthru
      _
    // Predicated region
    $region10: #{tpu_custom_call.1} parent=1 // pred_check
      _
    $region11: #{tpu_custom_call.1} parent=1 // pred_check_branch
      %45 = sbr.rel (0) target = $region13
    $region12: #{tpu_custom_call.1} parent=1 // pred_region
      %s47 = ssub.s32 256, 256
      %48 = vsyncadd [#allocation6], %s47
      %s49 = sshll.u32 [#allocation5], 4
      %s50 = int_to_ptr.vmem [resolvable:$true] %s49
      %55 = dma.hbm_to_vmem [thread:$0]  %s2, 256, %s50, [#allocation6], 64, 64, 4
    $region13: #{tpu_custom_call.1} parent=1 // pred_fallthru
      _
    // Predicated region
    $region14: #{tpu_custom_call.1} parent=1 // pred_check
      _
    $region15: #{tpu_custom_call.1} parent=1 // pred_check_branch
      %57 = sbr.rel (0) target = $region17
    $region16: #{tpu_custom_call.1} parent=1 // pred_region
      %s59 = ssub.s32 256, 256
      %60 = vsyncadd [#allocation6], %s59
      %s61 = sshll.u32 [#allocation7], 4
      %s62 = int_to_ptr.vmem [resolvable:$true] %s61
      %67 = dma.hbm_to_vmem [thread:$0]  %s3, 256, %s62, [#allocation6], 64, 64, 4
    $region17: #{tpu_custom_call.1} parent=1 // pred_fallthru
      _
    // Predicated region
    $region18: #{tpu_custom_call.1} parent=1 // pred_check
      _
    $region19: #{tpu_custom_call.1} parent=1 // pred_check_branch
      %69 = sbr.rel (0) target = $region21
    $region20: #{tpu_custom_call.1} parent=1 // pred_region
      _
    $region21: #{tpu_custom_call.1} parent=1 // pred_fallthru
      _
    // Predicated region
    $region22: #{tpu_custom_call.1} parent=1 // pred_check
      _
    $region23: #{tpu_custom_call.1} parent=1 // pred_check_branch
      %71 = sbr.rel (0) target = $region25
    $region24: #{tpu_custom_call.1} parent=1 // pred_region
      %s73 = ssub.s32 128, 128
      %74 = vsyncadd [#allocation9], %s73
      %s75 = sshll.u32 [#allocation8], 4
      %s76 = int_to_ptr.vmem [resolvable:$true] %s75
      %81 = dma.hbm_to_vmem [thread:$0]  %s5, 128, %s76, [#allocation9], 64, 64, 4
    $region25: #{tpu_custom_call.1} parent=1 // pred_fallthru
      _
    // Predicated region
    $region26: #{tpu_custom_call.1} parent=1 // pred_check
      _
    $region27: #{tpu_custom_call.1} parent=1 // pred_check_branch
      %83 = sbr.rel (0) target = $region29
    $region28: #{tpu_custom_call.1} parent=1 // pred_region
      _
    $region29: #{tpu_custom_call.1} parent=1 // pred_fallthru
      _
    // Predicated region
    $region30: #{tpu_custom_call.1} parent=1 // pred_check
      _
    $region31: #{tpu_custom_call.1} parent=1 // pred_check_branch
      %85 = sbr.rel (0) target = $region33
    $region32: #{tpu_custom_call.1} parent=1 // pred_region
      _
    $region33: #{tpu_custom_call.1} parent=1 // pred_fallthru
      _
    // Predicated region
    $region34: #{tpu_custom_call.1} parent=1 // pred_check
      _
    $region35: #{tpu_custom_call.1} parent=1 // pred_check_branch
      %87 = sbr.rel (0) target = $region37
    $region36: #{tpu_custom_call.1} parent=1 // pred_region
      _
    $region37: #{tpu_custom_call.1} parent=1 // pred_fallthru
      _
    // Predicated region
    $region38: #{tpu_custom_call.1} parent=1 // pred_check
      _
    $region39: #{tpu_custom_call.1} parent=1 // pred_check_branch
      %89 = sbr.rel (0) target = $region41
    $region40: #{tpu_custom_call.1} parent=1 // pred_region
      _
    $region41: #{tpu_custom_call.1} parent=1 // pred_fallthru
      _
    // Predicated region
    $region42: #{tpu_custom_call.1} parent=1 // pred_check
      _
    $region43: #{tpu_custom_call.1} parent=1 // pred_check_branch
      %91 = sbr.rel (0) target = $region45
    $region44: #{tpu_custom_call.1} parent=1 // pred_region
      _
    $region45: #{tpu_custom_call.1} parent=1 // pred_fallthru
      _
    // Predicated region
    $region46: #{tpu_custom_call.1} parent=1 // pred_check
      _
    $region47: #{tpu_custom_call.1} parent=1 // pred_check_branch
      %93 = sbr.rel (0) target = $region49
    $region48: #{tpu_custom_call.1} parent=1 // pred_region
      _
    $region49: #{tpu_custom_call.1} parent=1 // pred_fallthru
      _
    // Predicated region
    $region50: #{tpu_custom_call.1} parent=1 // pred_check
      _
    $region51: #{tpu_custom_call.1} parent=1 // pred_check_branch
      %95 = sbr.rel (0) target = $region53
    $region52: #{tpu_custom_call.1} parent=1 // pred_region
      _
    $region53: #{tpu_custom_call.1} parent=1 // pred_fallthru
      _
    // Predicated region
    $region54: #{tpu_custom_call.1} parent=1 // pred_check
      _
    $region55: #{tpu_custom_call.1} parent=1 // pred_check_branch
      %97 = sbr.rel (0) target = $region57
    $region56: #{tpu_custom_call.1} parent=1 // pred_region
      _
    $region57: #{tpu_custom_call.1} parent=1 // pred_fallthru
      _
    // Predicated region
    $region58: #{tpu_custom_call.1} parent=1 // pred_check
      _
    $region59: #{tpu_custom_call.1} parent=1 // pred_check_branch
      %99 = sbr.rel (0) target = $region61
    $region60: #{tpu_custom_call.1} parent=1 // pred_region
      _
    $region61: #{tpu_custom_call.1} parent=1 // pred_fallthru
      _
    // Predicated region
    $region62: #{tpu_custom_call.1} parent=1 // pred_check
      _
    $region63: #{tpu_custom_call.1} parent=1 // pred_check_branch
      %101 = sbr.rel (0) target = $region65
    $region64: #{tpu_custom_call.1} parent=1 // pred_region
      _
    $region65: #{tpu_custom_call.1} parent=1 // pred_fallthru
      _
    // Predicated region
    $region66: #{tpu_custom_call.1} parent=1 // pred_check
      _
    $region67: #{tpu_custom_call.1} parent=1 // pred_check_branch
      %103 = sbr.rel (0) target = $region69
    $region68: #{tpu_custom_call.1} parent=1 // pred_region
      _
    $region69: #{tpu_custom_call.1} parent=1 // pred_fallthru
      _
    // Predicated region
    $region70: #{tpu_custom_call.1} parent=1 // pred_check
      _
    $region71: #{tpu_custom_call.1} parent=1 // pred_check_branch
      %105 = sbr.rel (0) target = $region73
    $region72: #{tpu_custom_call.1} parent=1 // pred_region
      %106 = dma.done [#allocation3], 192
    $region73: #{tpu_custom_call.1} parent=1 // pred_fallthru
      _
    // Predicated region
    $region74: #{tpu_custom_call.1} parent=1 // pred_check
      _
    $region75: #{tpu_custom_call.1} parent=1 // pred_check_branch
      %108 = sbr.rel (0) target = $region77
    $region76: #{tpu_custom_call.1} parent=1 // pred_region
      %109 = dma.done [#allocation6], 256
    $region77: #{tpu_custom_call.1} parent=1 // pred_fallthru
      _
    // Predicated region
    $region78: #{tpu_custom_call.1} parent=1 // pred_check
      _
    $region79: #{tpu_custom_call.1} parent=1 // pred_check_branch
      %111 = sbr.rel (0) target = $region81
    $region80: #{tpu_custom_call.1} parent=1 // pred_region
      %112 = dma.done [#allocation6], 256
    $region81: #{tpu_custom_call.1} parent=1 // pred_fallthru
      _
    // Predicated region
    $region82: #{tpu_custom_call.1} parent=1 // pred_check
      _
    $region83: #{tpu_custom_call.1} parent=1 // pred_check_branch
      %114 = sbr.rel (0) target = $region85
    $region84: #{tpu_custom_call.1} parent=1 // pred_region
      %115 = dma.done [#allocation9], 128
    $region85: #{tpu_custom_call.1} parent=1 // pred_fallthru
      _
    %v117 = vld [vmem:[#allocation2] sm:$0xf]
    %v118 = vld [vmem:[#allocation2 + $0x4] sm:$0xf]
    %v119 = vld [vmem:[#allocation2 + $0x8] sm:$0xf]
    %v120 = vld [vmem:[%s0] sm:$0xff]
    %v121 = vld [vmem:[%s0 + $0x8] sm:$0xff]
    %v122 = vld [vmem:[%s0 + $0x10] sm:$0xff]
    %v123 = vld [vmem:[#allocation5] sm:$0xf]
    %v124 = vld [vmem:[#allocation5 + $0x4] sm:$0xf]
    %v125 = vld [vmem:[#allocation5 + $0x8] sm:$0xf]
    %v126 = vld [vmem:[#allocation5 + $0xc] sm:$0xf]
    %v127 = vpack.c.bf16 %v121, %v120
    %v128 = vpack.c.bf16 %v122, %v122
    %v133 = vunpack.c.l.b16 %v123
    %v134 = vunpack.c.l.b16 %v124
    %v135 = vunpack.c.l.b16 %v125
    %v136 = vunpack.c.l.b16 %v126
    %v137 = vpack.c.b16 %v134, %v133
    %v138 = vpack.c.b16 %v136, %v135
    %vm141 = vcmask 261120
    %v143 = vsel %vm141, %v127, 0
    %v146 = vsel %vm141, %v128, 0
    %148 = vmatprep.subr.bf16.mxu0 0
    %149 = vmatpush1.bf16.msra.mxu0 %v137
    %150 = vmatprep.subr.bf16.mxu0 0
    %151 = vmatpush1.bf16.msra.mxu0 %v138
    %152 = vmatprep.subr.bf16.mxu0 0
    %153 = vmatpush1.bf16.msra.mxu0 0
    %154 = vmatprep.subr.bf16.mxu0 0
    %155 = vmatpush1.bf16.msra.mxu0 0
    %156 = vmatprep.subr.bf16.mxu0 0
    %157 = vmatpush1.bf16.msra.mxu0 0
    %158 = vmatprep.subr.bf16.mxu0 0
    %159 = vmatpush1.bf16.msra.mxu0 0
    %160 = vmatprep.subr.bf16.mxu0 0
    %161 = vmatpush1.bf16.msra.mxu0 0
    %162 = vmatprep.subr.bf16.mxu0 0
    %163 = vmatpush1.bf16.msra.mxu0 0
    %164 = vmatprep.subr.bf16.mxu0 0
    %165 = vmatpush1.bf16.msra.mxu0 0
    %166 = vmatprep.subr.bf16.mxu0 0
    %167 = vmatpush1.bf16.msra.mxu0 0
    %168 = vmatprep.subr.bf16.mxu0 0
    %169 = vmatpush1.bf16.msra.mxu0 0
    %170 = vmatprep.subr.bf16.mxu0 0
    %171 = vmatpush1.bf16.msra.mxu0 0
    %172 = vmatprep.subr.bf16.mxu0 0
    %173 = vmatpush1.bf16.msra.mxu0 0
    %174 = vmatprep.subr.bf16.mxu0 0
    %175 = vmatpush1.bf16.msra.mxu0 0
    %176 = vmatprep.subr.bf16.mxu0 0
    %177 = vmatpush1.bf16.msra.mxu0 0
    %178 = vmatprep.subr.bf16.mxu0 0
    %179 = vmatpush1.bf16.msra.mxu0 0
    %180 = vmatprep.mubr.bf16.mxu0 0
    %181 = vmatmul.mubr.bf16.gmra.mrb[0].mxu0 %v143
    %v182 = vpop.f32.mrb[0].mxu0
    %v183 = vadd.f32 0.0, %v182
    %v184 = vpop.f32.mrb[0].mxu0
    %v185 = vpop.f32.mrb[0].mxu0
    %v186 = vadd.f32 0.0, %v185
    %v187 = vpop.f32.mrb[0].mxu0
    %188 = vmatprep.mubr.bf16.mxu0 0
    %189 = vmatmul.mubr.bf16.gmra.mrb[0].mxu0 %v146
    %v190 = vpop.f32.mrb[0].mxu0
    %v191 = vadd.f32 0.0, %v190
    %v192 = vpop.f32.mrb[0].mxu0
    %v193 = vpop.f32.mrb[0].mxu0
    %v194 = vpop.f32.mrb[0].mxu0
    %195 = vdwg.mxu0
    %v196 = vpack.c.bf16 %v186, %v183
    %v197 = vpack.c.bf16 %v191, %v191
    %v201 = vunpack.c.l.b16 %v117
    %v202 = vunpack.c.l.b16 %v118
    %v203 = vunpack.c.l.b16 %v119
    %v204 = vpack.c.b16 %v202, %v201
    %v205 = vpack.c.b16 %v203, %v203
    %vm206 = vcmask 195584
    %v208 = vsel %vm206, %v204, 0
    %v211 = vsel %vm206, %v205, 0
    %vm213 = vcmask 1043456
    %v215 = vsel %vm213, %v197, 0
    %217 = vmatprep.subr.bf16.mxu0 0
    %218 = vmatpush1.bf16.msra.mxu0 %v196
    %219 = vmatprep.subr.bf16.mxu0 0
    %220 = vmatpush1.bf16.msra.mxu0 %v215
    %221 = vmatprep.subr.bf16.mxu0 0
    %222 = vmatpush1.bf16.msra.mxu0 0
    %223 = vmatprep.subr.bf16.mxu0 0
    %224 = vmatpush1.bf16.msra.mxu0 0
    %225 = vmatprep.subr.bf16.mxu0 0
    %226 = vmatpush1.bf16.msra.mxu0 0
    %227 = vmatprep.subr.bf16.mxu0 0
    %228 = vmatpush1.bf16.msra.mxu0 0
    %229 = vmatprep.subr.bf16.mxu0 0
    %230 = vmatpush1.bf16.msra.mxu0 0
    %231 = vmatprep.subr.bf16.mxu0 0
    %232 = vmatpush1.bf16.msra.mxu0 0
    %233 = vmatprep.subr.bf16.mxu0 0
    %234 = vmatpush1.bf16.msra.mxu0 0
    %235 = vmatprep.subr.bf16.mxu0 0
    %236 = vmatpush1.bf16.msra.mxu0 0
    %237 = vmatprep.subr.bf16.mxu0 0
    %238 = vmatpush1.bf16.msra.mxu0 0
    %239 = vmatprep.subr.bf16.mxu0 0
    %240 = vmatpush1.bf16.msra.mxu0 0
    %241 = vmatprep.subr.bf16.mxu0 0
    %242 = vmatpush1.bf16.msra.mxu0 0
    %243 = vmatprep.subr.bf16.mxu0 0
    %244 = vmatpush1.bf16.msra.mxu0 0
    %245 = vmatprep.subr.bf16.mxu0 0
    %246 = vmatpush1.bf16.msra.mxu0 0
    %247 = vmatprep.subr.bf16.mxu0 0
    %248 = vmatpush1.bf16.msra.mxu0 0
    %249 = vmatprep.mubr.bf16.mxu0 0
    %250 = vmatmul.mubr.bf16.gmra.mrb[0].mxu0 %v208
    %v251 = vpop.f32.mrb[0].mxu0
    %v252 = vadd.f32 0.0, %v251
    %v253 = vpop.f32.mrb[0].mxu0
    %v254 = vpop.f32.mrb[0].mxu0
    %v255 = vadd.f32 0.0, %v254
    %v256 = vpop.f32.mrb[0].mxu0
    %257 = vmatprep.mubr.bf16.mxu0 0
    %258 = vmatmul.mubr.bf16.gmra.mrb[0].mxu0 %v211
    %v259 = vpop.f32.mrb[0].mxu0
    %v260 = vadd.f32 0.0, %v259
    %v261 = vpop.f32.mrb[0].mxu0
    %v262 = vpop.f32.mrb[0].mxu0
    %v263 = vpop.f32.mrb[0].mxu0
    %264 = vdwg.mxu0
    %v265 = vmax.f32 %v252, 0.0
    %v266 = vmax.f32 %v255, 0.0
    %v267 = vmax.f32 %v260, 0.0
    %v268 = vld [vmem:[#allocation7] sm:$0xf]
    %v269 = vld [vmem:[#allocation7 + $0x4] sm:$0xf]
    %v270 = vld [vmem:[#allocation7 + $0x8] sm:$0xf]
    %v271 = vld [vmem:[#allocation7 + $0xc] sm:$0xf]
    %v272 = vpack.c.bf16 %v266, %v265
    %v273 = vpack.c.bf16 %v267, %v267
    %v278 = vunpack.c.l.b16 %v268
    %v279 = vunpack.c.l.b16 %v269
    %v280 = vunpack.c.l.b16 %v270
    %v281 = vunpack.c.l.b16 %v271
    %v282 = vpack.c.b16 %v279, %v278
    %v283 = vpack.c.b16 %v281, %v280
    %v287 = vsel %vm141, %v272, 0
    %v290 = vsel %vm141, %v273, 0
    %292 = vmatprep.subr.bf16.mxu0 0
    %293 = vmatpush1.bf16.msra.mxu0 %v282
    %294 = vmatprep.subr.bf16.mxu0 0
    %295 = vmatpush1.bf16.msra.mxu0 %v283
    %296 = vmatprep.subr.bf16.mxu0 0
    %297 = vmatpush1.bf16.msra.mxu0 0
    %298 = vmatprep.subr.bf16.mxu0 0
    %299 = vmatpush1.bf16.msra.mxu0 0
    %300 = vmatprep.subr.bf16.mxu0 0
    %301 = vmatpush1.bf16.msra.mxu0 0
    %302 = vmatprep.subr.bf16.mxu0 0
    %303 = vmatpush1.bf16.msra.mxu0 0
    %304 = vmatprep.subr.bf16.mxu0 0
    %305 = vmatpush1.bf16.msra.mxu0 0
    %306 = vmatprep.subr.bf16.mxu0 0
    %307 = vmatpush1.bf16.msra.mxu0 0
    %308 = vmatprep.subr.bf16.mxu0 0
    %309 = vmatpush1.bf16.msra.mxu0 0
    %310 = vmatprep.subr.bf16.mxu0 0
    %311 = vmatpush1.bf16.msra.mxu0 0
    %312 = vmatprep.subr.bf16.mxu0 0
    %313 = vmatpush1.bf16.msra.mxu0 0
    %314 = vmatprep.subr.bf16.mxu0 0
    %315 = vmatpush1.bf16.msra.mxu0 0
    %316 = vmatprep.subr.bf16.mxu0 0
    %317 = vmatpush1.bf16.msra.mxu0 0
    %318 = vmatprep.subr.bf16.mxu0 0
    %319 = vmatpush1.bf16.msra.mxu0 0
    %320 = vmatprep.subr.bf16.mxu0 0
    %321 = vmatpush1.bf16.msra.mxu0 0
    %322 = vmatprep.subr.bf16.mxu0 0
    %323 = vmatpush1.bf16.msra.mxu0 0
    %324 = vmatprep.mubr.bf16.mxu0 0
    %325 = vmatmul.mubr.bf16.gmra.mrb[0].mxu0 %v287
    %v326 = vpop.f32.mrb[0].mxu0
    %v327 = vadd.f32 0.0, %v326
    %v328 = vpop.f32.mrb[0].mxu0
    %v329 = vpop.f32.mrb[0].mxu0
    %v330 = vadd.f32 0.0, %v329
    %v331 = vpop.f32.mrb[0].mxu0
    %332 = vmatprep.mubr.bf16.mxu0 0
    %333 = vmatmul.mubr.bf16.gmra.mrb[0].mxu0 %v290
    %v334 = vpop.f32.mrb[0].mxu0
    %v335 = vadd.f32 0.0, %v334
    %v336 = vpop.f32.mrb[0].mxu0
    %v337 = vpop.f32.mrb[0].mxu0
    %v338 = vpop.f32.mrb[0].mxu0
    %339 = vdwg.mxu0
    %v340 = vpack.c.bf16 %v330, %v327
    %v341 = vpack.c.bf16 %v335, %v335
    %v343 = vsel %vm213, %v341, 0
    %345 = vmatprep.subr.bf16.mxu0 0
    %346 = vmatpush1.bf16.msra.mxu0 %v340
    %347 = vmatprep.subr.bf16.mxu0 0
    %348 = vmatpush1.bf16.msra.mxu0 %v343
    %349 = vmatprep.subr.bf16.mxu0 0
    %350 = vmatpush1.bf16.msra.mxu0 0
    %351 = vmatprep.subr.bf16.mxu0 0
    %352 = vmatpush1.bf16.msra.mxu0 0
    %353 = vmatprep.subr.bf16.mxu0 0
    %354 = vmatpush1.bf16.msra.mxu0 0
    %355 = vmatprep.subr.bf16.mxu0 0
    %356 = vmatpush1.bf16.msra.mxu0 0
    %357 = vmatprep.subr.bf16.mxu0 0
    %358 = vmatpush1.bf16.msra.mxu0 0
    %359 = vmatprep.subr.bf16.mxu0 0
    %360 = vmatpush1.bf16.msra.mxu0 0
    %361 = vmatprep.subr.bf16.mxu0 0
    %362 = vmatpush1.bf16.msra.mxu0 0
    %363 = vmatprep.subr.bf16.mxu0 0
    %364 = vmatpush1.bf16.msra.mxu0 0
    %365 = vmatprep.subr.bf16.mxu0 0
    %366 = vmatpush1.bf16.msra.mxu0 0
    %367 = vmatprep.subr.bf16.mxu0 0
    %368 = vmatpush1.bf16.msra.mxu0 0
    %369 = vmatprep.subr.bf16.mxu0 0
    %370 = vmatpush1.bf16.msra.mxu0 0
    %371 = vmatprep.subr.bf16.mxu0 0
    %372 = vmatpush1.bf16.msra.mxu0 0
    %373 = vmatprep.subr.bf16.mxu0 0
    %374 = vmatpush1.bf16.msra.mxu0 0
    %375 = vmatprep.subr.bf16.mxu0 0
    %376 = vmatpush1.bf16.msra.mxu0 0
    %377 = vmatprep.mubr.bf16.mxu0 0
    %378 = vmatmul.mubr.bf16.gmra.mrb[0].mxu0 %v208
    %v379 = vpop.f32.mrb[0].mxu0
    %v380 = vadd.f32 0.0, %v379
    %v381 = vpop.f32.mrb[0].mxu0
    %v382 = vpop.f32.mrb[0].mxu0
    %v383 = vadd.f32 0.0, %v382
    %v384 = vpop.f32.mrb[0].mxu0
    %385 = vmatprep.mubr.bf16.mxu0 0
    %386 = vmatmul.mubr.bf16.gmra.mrb[0].mxu0 %v211
    %v387 = vpop.f32.mrb[0].mxu0
    %v388 = vadd.f32 0.0, %v387
    %v389 = vpop.f32.mrb[0].mxu0
    %v390 = vpop.f32.mrb[0].mxu0
    %v391 = vpop.f32.mrb[0].mxu0
    %392 = vdwg.mxu0
    %v393 = vmax.f32 %v380, 0.0
    %v394 = vmax.f32 %v383, 0.0
    %v395 = vmax.f32 %v388, 0.0
    %v396 = vld [vmem:[%s4] sm:$0xf]
    %v397 = vld [vmem:[%s4 + $0x4] sm:$0xf]
    %v398 = vld [vmem:[%s4 + $0x8] sm:$0xf]
    %v399 = vld [vmem:[%s4 + $0xc] sm:$0xf]
    %v400 = vpack.c.bf16 %v394, %v393
    %v401 = vpack.c.bf16 %v395, %v395
    %v406 = vunpack.c.l.b16 %v396
    %v407 = vunpack.c.l.b16 %v397
    %v408 = vunpack.c.l.b16 %v398
    %v409 = vunpack.c.l.b16 %v399
    %v410 = vpack.c.b16 %v407, %v406
    %v411 = vpack.c.b16 %v409, %v408
    %v415 = vsel %vm141, %v400, 0
    %v418 = vsel %vm141, %v401, 0
    %420 = vmatprep.subr.bf16.mxu0 0
    %421 = vmatpush1.bf16.msra.mxu0 %v410
    %422 = vmatprep.subr.bf16.mxu0 0
    %423 = vmatpush1.bf16.msra.mxu0 %v411
    %424 = vmatprep.subr.bf16.mxu0 0
    %425 = vmatpush1.bf16.msra.mxu0 0
    %426 = vmatprep.subr.bf16.mxu0 0
    %427 = vmatpush1.bf16.msra.mxu0 0
    %428 = vmatprep.subr.bf16.mxu0 0
    %429 = vmatpush1.bf16.msra.mxu0 0
    %430 = vmatprep.subr.bf16.mxu0 0
    %431 = vmatpush1.bf16.msra.mxu0 0
    %432 = vmatprep.subr.bf16.mxu0 0
    %433 = vmatpush1.bf16.msra.mxu0 0
    %434 = vmatprep.subr.bf16.mxu0 0
    %435 = vmatpush1.bf16.msra.mxu0 0
    %436 = vmatprep.subr.bf16.mxu0 0
    %437 = vmatpush1.bf16.msra.mxu0 0
    %438 = vmatprep.subr.bf16.mxu0 0
    %439 = vmatpush1.bf16.msra.mxu0 0
    %440 = vmatprep.subr.bf16.mxu0 0
    %441 = vmatpush1.bf16.msra.mxu0 0
    %442 = vmatprep.subr.bf16.mxu0 0
    %443 = vmatpush1.bf16.msra.mxu0 0
    %444 = vmatprep.subr.bf16.mxu0 0
    %445 = vmatpush1.bf16.msra.mxu0 0
    %446 = vmatprep.subr.bf16.mxu0 0
    %447 = vmatpush1.bf16.msra.mxu0 0
    %448 = vmatprep.subr.bf16.mxu0 0
    %449 = vmatpush1.bf16.msra.mxu0 0
    %450 = vmatprep.subr.bf16.mxu0 0
    %451 = vmatpush1.bf16.msra.mxu0 0
    %452 = vmatprep.mubr.bf16.mxu0 0
    %453 = vmatmul.mubr.bf16.gmra.mrb[0].mxu0 %v415
    %v454 = vpop.f32.mrb[0].mxu0
    %v455 = vadd.f32 0.0, %v454
    %v456 = vpop.f32.mrb[0].mxu0
    %v457 = vpop.f32.mrb[0].mxu0
    %v458 = vadd.f32 0.0, %v457
    %v459 = vpop.f32.mrb[0].mxu0
    %460 = vmatprep.mubr.bf16.mxu0 0
    %461 = vmatmul.mubr.bf16.gmra.mrb[0].mxu0 %v418
    %v462 = vpop.f32.mrb[0].mxu0
    %v463 = vadd.f32 0.0, %v462
    %v464 = vpop.f32.mrb[0].mxu0
    %v465 = vpop.f32.mrb[0].mxu0
    %v466 = vpop.f32.mrb[0].mxu0
    %467 = vdwg.mxu0
    %v468 = vpack.c.bf16 %v458, %v455
    %v469 = vpack.c.bf16 %v463, %v463
    %v471 = vsel %vm213, %v469, 0
    %473 = vmatprep.subr.bf16.mxu0 0
    %474 = vmatpush1.bf16.msra.mxu0 %v468
    %475 = vmatprep.subr.bf16.mxu0 0
    %476 = vmatpush1.bf16.msra.mxu0 %v471
    %477 = vmatprep.subr.bf16.mxu0 0
    %478 = vmatpush1.bf16.msra.mxu0 0
    %479 = vmatprep.subr.bf16.mxu0 0
    %480 = vmatpush1.bf16.msra.mxu0 0
    %481 = vmatprep.subr.bf16.mxu0 0
    %482 = vmatpush1.bf16.msra.mxu0 0
    %483 = vmatprep.subr.bf16.mxu0 0
    %484 = vmatpush1.bf16.msra.mxu0 0
    %485 = vmatprep.subr.bf16.mxu0 0
    %486 = vmatpush1.bf16.msra.mxu0 0
    %487 = vmatprep.subr.bf16.mxu0 0
    %488 = vmatpush1.bf16.msra.mxu0 0
    %489 = vmatprep.subr.bf16.mxu0 0
    %490 = vmatpush1.bf16.msra.mxu0 0
    %491 = vmatprep.subr.bf16.mxu0 0
    %492 = vmatpush1.bf16.msra.mxu0 0
    %493 = vmatprep.subr.bf16.mxu0 0
    %494 = vmatpush1.bf16.msra.mxu0 0
    %495 = vmatprep.subr.bf16.mxu0 0
    %496 = vmatpush1.bf16.msra.mxu0 0
    %497 = vmatprep.subr.bf16.mxu0 0
    %498 = vmatpush1.bf16.msra.mxu0 0
    %499 = vmatprep.subr.bf16.mxu0 0
    %500 = vmatpush1.bf16.msra.mxu0 0
    %501 = vmatprep.subr.bf16.mxu0 0
    %502 = vmatpush1.bf16.msra.mxu0 0
    %503 = vmatprep.subr.bf16.mxu0 0
    %504 = vmatpush1.bf16.msra.mxu0 0
    %505 = vmatprep.mubr.bf16.mxu0 0
    %506 = vmatmul.mubr.bf16.gmra.mrb[0].mxu0 %v208
    %v507 = vpop.f32.mrb[0].mxu0
    %v508 = vadd.f32 0.0, %v507
    %v509 = vpop.f32.mrb[0].mxu0
    %v510 = vpop.f32.mrb[0].mxu0
    %v511 = vadd.f32 0.0, %v510
    %v512 = vpop.f32.mrb[0].mxu0
    %513 = vmatprep.mubr.bf16.mxu0 0
    %514 = vmatmul.mubr.bf16.gmra.mrb[0].mxu0 %v211
    %v515 = vpop.f32.mrb[0].mxu0
    %v516 = vadd.f32 0.0, %v515
    %v517 = vpop.f32.mrb[0].mxu0
    %v518 = vpop.f32.mrb[0].mxu0
    %v519 = vpop.f32.mrb[0].mxu0
    %520 = vdwg.mxu0
    %v521 = vmax.f32 %v508, 0.0
    %v522 = vmax.f32 %v511, 0.0
    %v523 = vmax.f32 %v516, 0.0
    %v524 = vld [vmem:[#allocation8] sm:$0xf]
    %v525 = vld [vmem:[#allocation8 + $0x4] sm:$0xf]
    %v526 = vpack.c.bf16 %v522, %v521
    %v527 = vpack.c.bf16 %v523, %v523
    %v529 = vsel %vm213, %v527, 0
    %531 = vmatprep.subr.bf16.mxu0 0
    %532 = vmatpush1.bf16.msra.mxu0 %v526
    %533 = vmatprep.subr.bf16.mxu0 0
    %534 = vmatpush1.bf16.msra.mxu0 %v529
    %535 = vmatprep.subr.bf16.mxu0 0
    %536 = vmatpush1.bf16.msra.mxu0 0
    %537 = vmatprep.subr.bf16.mxu0 0
    %538 = vmatpush1.bf16.msra.mxu0 0
    %539 = vmatprep.subr.bf16.mxu0 0
    %540 = vmatpush1.bf16.msra.mxu0 0
    %541 = vmatprep.subr.bf16.mxu0 0
    %542 = vmatpush1.bf16.msra.mxu0 0
    %543 = vmatprep.subr.bf16.mxu0 0
    %544 = vmatpush1.bf16.msra.mxu0 0
    %545 = vmatprep.subr.bf16.mxu0 0
    %546 = vmatpush1.bf16.msra.mxu0 0
    %547 = vmatprep.subr.bf16.mxu0 0
    %548 = vmatpush1.bf16.msra.mxu0 0
    %549 = vmatprep.subr.bf16.mxu0 0
    %550 = vmatpush1.bf16.msra.mxu0 0
    %551 = vmatprep.subr.bf16.mxu0 0
    %552 = vmatpush1.bf16.msra.mxu0 0
    %553 = vmatprep.subr.bf16.mxu0 0
    %554 = vmatpush1.bf16.msra.mxu0 0
    %555 = vmatprep.subr.bf16.mxu0 0
    %556 = vmatpush1.bf16.msra.mxu0 0
    %557 = vmatprep.subr.bf16.mxu0 0
    %558 = vmatpush1.bf16.msra.mxu0 0
    %559 = vmatprep.subr.bf16.mxu0 0
    %560 = vmatpush1.bf16.msra.mxu0 0
    %561 = vmatprep.subr.bf16.mxu0 0
    %562 = vmatpush1.bf16.msra.mxu0 0
    %563 = vmatprep.mubr.bf16.mxu0 0
    %564 = vmatmul.mubr.bf16.gmra.mrb[0].mxu0 %v208
    %v565 = vpop.f32.mrb[0].mxu0
    %v566 = vadd.f32 0.0, %v565
    %v567 = vpop.f32.mrb[0].mxu0
    %v568 = vpop.f32.mrb[0].mxu0
    %v569 = vadd.f32 0.0, %v568
    %v570 = vpop.f32.mrb[0].mxu0
    %571 = vmatprep.mubr.bf16.mxu0 0
    %572 = vmatmul.mubr.bf16.gmra.mrb[0].mxu0 %v211
    %v573 = vpop.f32.mrb[0].mxu0
    %v574 = vadd.f32 0.0, %v573
    %v575 = vpop.f32.mrb[0].mxu0
    %v576 = vpop.f32.mrb[0].mxu0
    %v577 = vpop.f32.mrb[0].mxu0
    %578 = vdwg.mxu0
    %v579 = vpack.c.bf16 %v569, %v566
    %v580 = vpack.c.bf16 %v574, %v574
    %v583 = vunpack.c.l.b16 %v524
    %v584 = vunpack.c.l.b16 %v525
    %v585 = vpack.c.b16 %v584, %v583
    %vm587 = vcmask 130048
    %v589 = vsel %vm587, %v579, 0
    %v592 = vsel %vm587, %v580, 0
    %594 = vmatprep.subr.bf16.mxu0 0
    %595 = vmatpush1.bf16.msra.mxu0 %v585
    %596 = vmatprep.subr.bf16.mxu0 0
    %597 = vmatpush1.bf16.msra.mxu0 0
    %598 = vmatprep.subr.bf16.mxu0 0
    %599 = vmatpush1.bf16.msra.mxu0 0
    %600 = vmatprep.subr.bf16.mxu0 0
    %601 = vmatpush1.bf16.msra.mxu0 0
    %602 = vmatprep.subr.bf16.mxu0 0
    %603 = vmatpush1.bf16.msra.mxu0 0
    %604 = vmatprep.subr.bf16.mxu0 0
    %605 = vmatpush1.bf16.msra.mxu0 0
    %606 = vmatprep.subr.bf16.mxu0 0
    %607 = vmatpush1.bf16.msra.mxu0 0
    %608 = vmatprep.subr.bf16.mxu0 0
    %609 = vmatpush1.bf16.msra.mxu0 0
    %610 = vmatprep.subr.bf16.mxu0 0
    %611 = vmatpush1.bf16.msra.mxu0 0
    %612 = vmatprep.subr.bf16.mxu0 0
    %613 = vmatpush1.bf16.msra.mxu0 0
    %614 = vmatprep.subr.bf16.mxu0 0
    %615 = vmatpush1.bf16.msra.mxu0 0
    %616 = vmatprep.subr.bf16.mxu0 0
    %617 = vmatpush1.bf16.msra.mxu0 0
    %618 = vmatprep.subr.bf16.mxu0 0
    %619 = vmatpush1.bf16.msra.mxu0 0
    %620 = vmatprep.subr.bf16.mxu0 0
    %621 = vmatpush1.bf16.msra.mxu0 0
    %622 = vmatprep.subr.bf16.mxu0 0
    %623 = vmatpush1.bf16.msra.mxu0 0
    %624 = vmatprep.subr.bf16.mxu0 0
    %625 = vmatpush1.bf16.msra.mxu0 0
    %626 = vmatprep.mubr.bf16.mxu0 0
    %627 = vmatmul.mubr.bf16.gmra.mrb[0].mxu0 %v589
    %v628 = vpop.f32.mrb[0].mxu0
    %v629 = vadd.f32 0.0, %v628
    %v630 = vpop.f32.mrb[0].mxu0
    %v631 = vpop.f32.mrb[0].mxu0
    %v632 = vadd.f32 0.0, %v631
    %v633 = vpop.f32.mrb[0].mxu0
    %634 = vmatprep.mubr.bf16.mxu0 0
    %635 = vmatmul.mubr.bf16.gmra.mrb[0].mxu0 %v592
    %v636 = vpop.f32.mrb[0].mxu0
    %v637 = vadd.f32 0.0, %v636
    %v638 = vpop.f32.mrb[0].mxu0
    %v639 = vpop.f32.mrb[0].mxu0
    %v640 = vpop.f32.mrb[0].mxu0
    %641 = vdwg.mxu0
    %v642 = vmax.f32 %v629, 0.0
    %v643 = vmax.f32 %v632, 0.0
    %v644 = vmax.f32 %v637, 0.0
    %v645 = vpack.c.bf16 %v643, %v642
    %v646 = vpack.c.bf16 %v644, %v644
    %v648 = vsel %vm141, %v645, 0
    %v651 = vsel %vm141, %v646, 0
    %653 = vmatprep.subr.bf16.mxu0 0
    %654 = vmatpush1.bf16.xpose.msra.mxu0 %v648
    %655 = vmatprep.subr.bf16.mxu0 0
    %656 = vmatpush1.bf16.xpose.msra.mxu0 %v651
    %657 = vmatprep.subr.bf16.mxu0 0
    %658 = vmatpush1.bf16.xpose.msra.mxu0 0
    %659 = vmatprep.subr.bf16.mxu0 0
    %660 = vmatpush1.bf16.xpose.msra.mxu0 0
    %661 = vmatprep.subr.bf16.mxu0 0
    %662 = vmatpush1.bf16.xpose.msra.mxu0 0
    %663 = vmatprep.subr.bf16.mxu0 0
    %664 = vmatpush1.bf16.xpose.msra.mxu0 0
    %665 = vmatprep.subr.bf16.mxu0 0
    %666 = vmatpush1.bf16.xpose.msra.mxu0 0
    %667 = vmatprep.subr.bf16.mxu0 0
    %668 = vmatpush1.bf16.xpose.msra.mxu0 0
    %669 = vmatprep.subr.bf16.mxu0 0
    %670 = vmatpush1.bf16.xpose.msra.mxu0 0
    %671 = vmatprep.subr.bf16.mxu0 0
    %672 = vmatpush1.bf16.xpose.msra.mxu0 0
    %673 = vmatprep.subr.bf16.mxu0 0
    %674 = vmatpush1.bf16.xpose.msra.mxu0 0
    %675 = vmatprep.subr.bf16.mxu0 0
    %676 = vmatpush1.bf16.xpose.msra.mxu0 0
    %677 = vmatprep.subr.bf16.mxu0 0
    %678 = vmatpush1.bf16.xpose.msra.mxu0 0
    %679 = vmatprep.subr.bf16.mxu0 0
    %680 = vmatpush1.bf16.xpose.msra.mxu0 0
    %681 = vmatprep.subr.bf16.mxu0 0
    %682 = vmatpush1.bf16.xpose.msra.mxu0 0
    %683 = vmatprep.subr.bf16.mxu0 0
    %684 = vmatpush1.bf16.xpose.msra.mxu0 0
    %685 = vmatprep.mubr.bf16.mxu0 0
    %686 = vmatmul.mubr.bf16.gmra.mrb[0].mxu0 %v648
    %v687 = vpop.f32.mrb[0].mxu0
    %v688 = vadd.f32 0.0, %v687
    %v689 = vpop.f32.mrb[0].mxu0
    %v690 = vpop.f32.mrb[0].mxu0
    %v691 = vadd.f32 0.0, %v690
    %v692 = vpop.f32.mrb[0].mxu0
    %693 = vmatprep.mubr.bf16.mxu0 0
    %694 = vmatmul.mubr.bf16.gmra.mrb[0].mxu0 %v651
    %v695 = vpop.f32.mrb[0].mxu0
    %v696 = vadd.f32 0.0, %v695
    %v697 = vpop.f32.mrb[0].mxu0
    %v698 = vpop.f32.mrb[0].mxu0
    %v699 = vpop.f32.mrb[0].mxu0
    %700 = vdwg.mxu0
    %v701 = vmul.f32 %v688, 0.5
    %v702 = vmul.f32 %v691, 0.5
    %v703 = vmul.f32 %v696, 0.5
    %v704 = vtanh.pop %v701
    %v705 = vtanh.pop %v702
    %v706 = vtanh.pop %v703
    %v707 = vadd.f32 %v704, 1.0
    %v708 = vadd.f32 %v705, 1.0
    %v709 = vadd.f32 %v706, 1.0
    %v710 = vmul.f32 %v707, 0.5
    %v711 = vmul.f32 %v708, 0.5
    %v712 = vmul.f32 %v709, 0.5
    %v713 = vsel %vm206, %v710, 0.0
    %v714 = vsel %vm206, %v711, 0.0
    %v715 = vsel %vm206, %v712, 0.0
    %716 = vst [vmem:[#allocation10] sm:$0xff] %v713
    %717 = vst [vmem:[#allocation10 + $0x8] sm:$0xff] %v714
    %718 = vst [vmem:[#allocation10 + $0x10] sm:$0xff] %v715
    %v719 = vld [vmem:[%s7] sm:$0xff]
    %v720 = vld [vmem:[%s7 + $0x8] sm:$0xff]
    %v721 = vld [vmem:[%s7 + $0x10] sm:$0xff]
    %v722 = vld [vmem:[%s7 + $0x18] sm:$0xff]
    %v723 = vld [vmem:[%s8] sm:$0x1]
    %v725 = vlaneseq
    %v726 = vshrl.u32 %v725, 7
    %v727 = vsub.s32 0, %v726
    %v728 = vrot.slane %v723, %v727
    %v731 = vsel %vm141, %v642, 0
    %v734 = vsel %vm141, %v643, 0
    %v737 = vsel %vm141, %v644, 0
    %739 = vmatprep.subr.mxu0 0.0
    %740 = vmatpush1.msra.mxu0 %v719
    %741 = vmatprep.subr.mxu0 0.0
    %742 = vmatpush1.msra.mxu0 %v720
    %743 = vmatprep.subr.mxu0 0.0
    %744 = vmatpush1.msra.mxu0 %v721
    %745 = vmatprep.subr.mxu0 0.0
    %746 = vmatpush1.msra.mxu0 %v722
    %747 = vmatprep.subr.mxu0 0.0
    %748 = vmatpush1.msra.mxu0 0.0
    %749 = vmatprep.subr.mxu0 0.0
    %750 = vmatpush1.msra.mxu0 0.0
    %751 = vmatprep.subr.mxu0 0.0
    %752 = vmatpush1.msra.mxu0 0.0
    %753 = vmatprep.subr.mxu0 0.0
    %754 = vmatpush1.msra.mxu0 0.0
    %755 = vmatprep.subr.mxu0 0.0
    %756 = vmatpush1.msra.mxu0 0.0
    %757 = vmatprep.subr.mxu0 0.0
    %758 = vmatpush1.msra.mxu0 0.0
    %759 = vmatprep.subr.mxu0 0.0
    %760 = vmatpush1.msra.mxu0 0.0
    %761 = vmatprep.subr.mxu0 0.0
    %762 = vmatpush1.msra.mxu0 0.0
    %763 = vmatprep.subr.mxu0 0.0
    %764 = vmatpush1.msra.mxu0 0.0
    %765 = vmatprep.subr.mxu0 0.0
    %766 = vmatpush1.msra.mxu0 0.0
    %767 = vmatprep.subr.mxu0 0.0
    %768 = vmatpush1.msra.mxu0 0.0
    %769 = vmatprep.subr.mxu0 0.0
    %770 = vmatpush1.msra.mxu0 0.0
    %771 = vmatprep.subr.mxu0 0.0
    %772 = vmatpush1.msra.mxu0 0.0
    %773 = vmatprep.subr.mxu0 0.0
    %774 = vmatpush1.msra.mxu0 0.0
    %775 = vmatprep.subr.mxu0 0.0
    %776 = vmatpush1.msra.mxu0 0.0
    %777 = vmatprep.subr.mxu0 0.0
    %778 = vmatpush1.msra.mxu0 0.0
    %779 = vmatprep.subr.mxu0 0.0
    %780 = vmatpush1.msra.mxu0 0.0
    %781 = vmatprep.subr.mxu0 0.0
    %782 = vmatpush1.msra.mxu0 0.0
    %783 = vmatprep.subr.mxu0 0.0
    %784 = vmatpush1.msra.mxu0 0.0
    %785 = vmatprep.subr.mxu0 0.0
    %786 = vmatpush1.msra.mxu0 0.0
    %787 = vmatprep.subr.mxu0 0.0
    %788 = vmatpush1.msra.mxu0 0.0
    %789 = vmatprep.subr.mxu0 0.0
    %790 = vmatpush1.msra.mxu0 0.0
    %791 = vmatprep.subr.mxu0 0.0
    %792 = vmatpush1.msra.mxu0 0.0
    %793 = vmatprep.subr.mxu0 0.0
    %794 = vmatpush1.msra.mxu0 0.0
    %795 = vmatprep.subr.mxu0 0.0
    %796 = vmatpush1.msra.mxu0 0.0
    %797 = vmatprep.subr.mxu0 0.0
    %798 = vmatpush1.msra.mxu0 0.0
    %799 = vmatprep.subr.mxu0 0.0
    %800 = vmatpush1.msra.mxu0 0.0
    %801 = vmatprep.subr.mxu0 0.0
    %802 = vmatpush1.msra.mxu0 0.0
    %803 = vmatprep.mubr.f32.mxu0 0.0
    %804 = vmatmul.mubr.f32.gmra.mrb[0].mxu0 %v731
    %v805 = vpop.f32.mrb[0].mxu0
    %v806 = vadd.f32 %v728, %v805
    %v807 = vpop.f32.mrb[0].mxu0
    %808 = vmatprep.mubr.f32.mxu0 0.0
    %809 = vmatmul.mubr.f32.gmra.mrb[0].mxu0 %v734
    %v810 = vpop.f32.mrb[0].mxu0
    %v811 = vadd.f32 %v728, %v810
    %v812 = vpop.f32.mrb[0].mxu0
    %813 = vmatprep.mubr.f32.mxu0 0.0
    %814 = vmatmul.mubr.f32.gmra.mrb[0].mxu0 %v737
    %v815 = vpop.f32.mrb[0].mxu0
    %v816 = vadd.f32 %v728, %v815
    %v817 = vpop.f32.mrb[0].mxu0
    %818 = vdwg.mxu0
    %v819 = vmax.f32 %v806, 0.0
    %v820 = vmax.f32 %v811, 0.0
    %v821 = vmax.f32 %v816, 0.0
    %v822 = vld [vmem:[%s9] sm:$0xff]
    %v823 = vld [vmem:[%s9 + $0x8] sm:$0xff]
    %v824 = vld [vmem:[%s10] sm:$0x1]
    %v826 = vlaneseq
    %v827 = vshrl.u32 %v826, 7
    %v828 = vsub.s32 0, %v827
    %v829 = vrot.slane %v824, %v828
    %v832 = vsel %vm587, %v819, 0
    %v835 = vsel %vm587, %v820, 0
    %v838 = vsel %vm587, %v821, 0
    %840 = vmatprep.subr.mxu0 0.0
    %841 = vmatpush1.msra.mxu0 %v822
    %842 = vmatprep.subr.mxu0 0.0
    %843 = vmatpush1.msra.mxu0 %v823
    %844 = vmatprep.subr.mxu0 0.0
    %845 = vmatpush1.msra.mxu0 0.0
    %846 = vmatprep.subr.mxu0 0.0
    %847 = vmatpush1.msra.mxu0 0.0
    %848 = vmatprep.subr.mxu0 0.0
    %849 = vmatpush1.msra.mxu0 0.0
    %850 = vmatprep.subr.mxu0 0.0
    %851 = vmatpush1.msra.mxu0 0.0
    %852 = vmatprep.subr.mxu0 0.0
    %853 = vmatpush1.msra.mxu0 0.0
    %854 = vmatprep.subr.mxu0 0.0
    %855 = vmatpush1.msra.mxu0 0.0
    %856 = vmatprep.subr.mxu0 0.0
    %857 = vmatpush1.msra.mxu0 0.0
    %858 = vmatprep.subr.mxu0 0.0
    %859 = vmatpush1.msra.mxu0 0.0
    %860 = vmatprep.subr.mxu0 0.0
    %861 = vmatpush1.msra.mxu0 0.0
    %862 = vmatprep.subr.mxu0 0.0
    %863 = vmatpush1.msra.mxu0 0.0
    %864 = vmatprep.subr.mxu0 0.0
    %865 = vmatpush1.msra.mxu0 0.0
    %866 = vmatprep.subr.mxu0 0.0
    %867 = vmatpush1.msra.mxu0 0.0
    %868 = vmatprep.subr.mxu0 0.0
    %869 = vmatpush1.msra.mxu0 0.0
    %870 = vmatprep.subr.mxu0 0.0
    %871 = vmatpush1.msra.mxu0 0.0
    %872 = vmatprep.subr.mxu0 0.0
    %873 = vmatpush1.msra.mxu0 0.0
    %874 = vmatprep.subr.mxu0 0.0
    %875 = vmatpush1.msra.mxu0 0.0
    %876 = vmatprep.subr.mxu0 0.0
    %877 = vmatpush1.msra.mxu0 0.0
    %878 = vmatprep.subr.mxu0 0.0
    %879 = vmatpush1.msra.mxu0 0.0
    %880 = vmatprep.subr.mxu0 0.0
    %881 = vmatpush1.msra.mxu0 0.0
    %882 = vmatprep.subr.mxu0 0.0
    %883 = vmatpush1.msra.mxu0 0.0
    %884 = vmatprep.subr.mxu0 0.0
    %885 = vmatpush1.msra.mxu0 0.0
    %886 = vmatprep.subr.mxu0 0.0
    %887 = vmatpush1.msra.mxu0 0.0
    %888 = vmatprep.subr.mxu0 0.0
    %889 = vmatpush1.msra.mxu0 0.0
    %890 = vmatprep.subr.mxu0 0.0
    %891 = vmatpush1.msra.mxu0 0.0
    %892 = vmatprep.subr.mxu0 0.0
    %893 = vmatpush1.msra.mxu0 0.0
    %894 = vmatprep.subr.mxu0 0.0
    %895 = vmatpush1.msra.mxu0 0.0
    %896 = vmatprep.subr.mxu0 0.0
    %897 = vmatpush1.msra.mxu0 0.0
    %898 = vmatprep.subr.mxu0 0.0
    %899 = vmatpush1.msra.mxu0 0.0
    %900 = vmatprep.subr.mxu0 0.0
    %901 = vmatpush1.msra.mxu0 0.0
    %902 = vmatprep.subr.mxu0 0.0
    %903 = vmatpush1.msra.mxu0 0.0
    %904 = vmatprep.mubr.f32.mxu0 0.0
    %905 = vmatmul.mubr.f32.gmra.mrb[0].mxu0 %v832
    %v906 = vpop.f32.mrb[0].mxu0
    %v907 = vadd.f32 %v829, %v906
    %v908 = vpop.f32.mrb[0].mxu0
    %909 = vmatprep.mubr.f32.mxu0 0.0
    %910 = vmatmul.mubr.f32.gmra.mrb[0].mxu0 %v835
    %v911 = vpop.f32.mrb[0].mxu0
    %v912 = vadd.f32 %v829, %v911
    %v913 = vpop.f32.mrb[0].mxu0
    %914 = vmatprep.mubr.f32.mxu0 0.0
    %915 = vmatmul.mubr.f32.gmra.mrb[0].mxu0 %v838
    %v916 = vpop.f32.mrb[0].mxu0
    %v917 = vadd.f32 %v829, %v916
    %v918 = vpop.f32.mrb[0].mxu0
    %919 = vdwg.mxu0
    %v920 = vmax.f32 %v907, 0.0
    %v921 = vmax.f32 %v912, 0.0
    %v922 = vmax.f32 %v917, 0.0
    %v923 = vld [vmem:[%s11] sm:$0xff]
    %v924 = vld [vmem:[%s11 + $0x8] sm:$0xff]
    %v925 = vld [vmem:[%s11 + $0x10] sm:$0xff]
    %v926 = vld [vmem:[%s11 + $0x18] sm:$0xff]
    %v927 = vld [vmem:[%s12] sm:$0x1]
    %v929 = vlaneseq
    %v930 = vshrl.u32 %v929, 7
    %v931 = vsub.s32 0, %v930
    %v932 = vrot.slane %v927, %v931
    %v935 = vsel %vm141, %v920, 0
    %v938 = vsel %vm141, %v921, 0
    %v941 = vsel %vm141, %v922, 0
    %943 = vmatprep.subr.mxu0 0.0
    %944 = vmatpush1.msra.mxu0 %v923
    %945 = vmatprep.subr.mxu0 0.0
    %946 = vmatpush1.msra.mxu0 %v924
    %947 = vmatprep.subr.mxu0 0.0
    %948 = vmatpush1.msra.mxu0 %v925
    %949 = vmatprep.subr.mxu0 0.0
    %950 = vmatpush1.msra.mxu0 %v926
    %951 = vmatprep.subr.mxu0 0.0
    %952 = vmatpush1.msra.mxu0 0.0
    %953 = vmatprep.subr.mxu0 0.0
    %954 = vmatpush1.msra.mxu0 0.0
    %955 = vmatprep.subr.mxu0 0.0
    %956 = vmatpush1.msra.mxu0 0.0
    %957 = vmatprep.subr.mxu0 0.0
    %958 = vmatpush1.msra.mxu0 0.0
    %959 = vmatprep.subr.mxu0 0.0
    %960 = vmatpush1.msra.mxu0 0.0
    %961 = vmatprep.subr.mxu0 0.0
    %962 = vmatpush1.msra.mxu0 0.0
    %963 = vmatprep.subr.mxu0 0.0
    %964 = vmatpush1.msra.mxu0 0.0
    %965 = vmatprep.subr.mxu0 0.0
    %966 = vmatpush1.msra.mxu0 0.0
    %967 = vmatprep.subr.mxu0 0.0
    %968 = vmatpush1.msra.mxu0 0.0
    %969 = vmatprep.subr.mxu0 0.0
    %970 = vmatpush1.msra.mxu0 0.0
    %971 = vmatprep.subr.mxu0 0.0
    %972 = vmatpush1.msra.mxu0 0.0
    %973 = vmatprep.subr.mxu0 0.0
    %974 = vmatpush1.msra.mxu0 0.0
    %975 = vmatprep.subr.mxu0 0.0
    %976 = vmatpush1.msra.mxu0 0.0
    %977 = vmatprep.subr.mxu0 0.0
    %978 = vmatpush1.msra.mxu0 0.0
    %979 = vmatprep.subr.mxu0 0.0
    %980 = vmatpush1.msra.mxu0 0.0
    %981 = vmatprep.subr.mxu0 0.0
    %982 = vmatpush1.msra.mxu0 0.0
    %983 = vmatprep.subr.mxu0 0.0
    %984 = vmatpush1.msra.mxu0 0.0
    %985 = vmatprep.subr.mxu0 0.0
    %986 = vmatpush1.msra.mxu0 0.0
    %987 = vmatprep.subr.mxu0 0.0
    %988 = vmatpush1.msra.mxu0 0.0
    %989 = vmatprep.subr.mxu0 0.0
    %990 = vmatpush1.msra.mxu0 0.0
    %991 = vmatprep.subr.mxu0 0.0
    %992 = vmatpush1.msra.mxu0 0.0
    %993 = vmatprep.subr.mxu0 0.0
    %994 = vmatpush1.msra.mxu0 0.0
    %995 = vmatprep.subr.mxu0 0.0
    %996 = vmatpush1.msra.mxu0 0.0
    %997 = vmatprep.subr.mxu0 0.0
    %998 = vmatpush1.msra.mxu0 0.0
    %999 = vmatprep.subr.mxu0 0.0
    %1000 = vmatpush1.msra.mxu0 0.0
    %1001 = vmatprep.subr.mxu0 0.0
    %1002 = vmatpush1.msra.mxu0 0.0
    %1003 = vmatprep.subr.mxu0 0.0
    %1004 = vmatpush1.msra.mxu0 0.0
    %1005 = vmatprep.subr.mxu0 0.0
    %1006 = vmatpush1.msra.mxu0 0.0
    %1007 = vmatprep.mubr.f32.mxu0 0.0
    %1008 = vmatmul.mubr.f32.gmra.mrb[0].mxu0 %v935
    %v1009 = vpop.f32.mrb[0].mxu0
    %v1010 = vadd.f32 %v932, %v1009
    %v1011 = vpop.f32.mrb[0].mxu0
    %1012 = vmatprep.mubr.f32.mxu0 0.0
    %1013 = vmatmul.mubr.f32.gmra.mrb[0].mxu0 %v938
    %v1014 = vpop.f32.mrb[0].mxu0
    %v1015 = vadd.f32 %v932, %v1014
    %v1016 = vpop.f32.mrb[0].mxu0
    %1017 = vmatprep.mubr.f32.mxu0 0.0
    %1018 = vmatmul.mubr.f32.gmra.mrb[0].mxu0 %v941
    %v1019 = vpop.f32.mrb[0].mxu0
    %v1020 = vadd.f32 %v932, %v1019
    %v1021 = vpop.f32.mrb[0].mxu0
    %1022 = vdwg.mxu0
    %v1023 = vmax.f32 %v1010, 0.0
    %v1024 = vmax.f32 %v1015, 0.0
    %v1025 = vmax.f32 %v1020, 0.0
    %v1026 = vld [vmem:[%s13] sm:$0xff]
    %v1027 = vld [vmem:[%s13 + $0x8] sm:$0xff]
    %v1028 = vld [vmem:[%s13 + $0x10] sm:$0xff]
    %v1029 = vld [vmem:[%s13 + $0x18] sm:$0xff]
    %v1030 = vld [vmem:[%s14] sm:$0x1]
    %v1032 = vlaneseq
    %v1033 = vshrl.u32 %v1032, 7
    %v1034 = vsub.s32 0, %v1033
    %v1035 = vrot.slane %v1030, %v1034
    %v1038 = vsel %vm141, %v1023, 0
    %v1041 = vsel %vm141, %v1024, 0
    %v1044 = vsel %vm141, %v1025, 0
    %1046 = vmatprep.subr.mxu0 0.0
    %1047 = vmatpush1.msra.mxu0 %v1026
    %1048 = vmatprep.subr.mxu0 0.0
    %1049 = vmatpush1.msra.mxu0 %v1027
    %1050 = vmatprep.subr.mxu0 0.0
    %1051 = vmatpush1.msra.mxu0 %v1028
    %1052 = vmatprep.subr.mxu0 0.0
    %1053 = vmatpush1.msra.mxu0 %v1029
    %1054 = vmatprep.subr.mxu0 0.0
    %1055 = vmatpush1.msra.mxu0 0.0
    %1056 = vmatprep.subr.mxu0 0.0
    %1057 = vmatpush1.msra.mxu0 0.0
    %1058 = vmatprep.subr.mxu0 0.0
    %1059 = vmatpush1.msra.mxu0 0.0
    %1060 = vmatprep.subr.mxu0 0.0
    %1061 = vmatpush1.msra.mxu0 0.0
    %1062 = vmatprep.subr.mxu0 0.0
    %1063 = vmatpush1.msra.mxu0 0.0
    %1064 = vmatprep.subr.mxu0 0.0
    %1065 = vmatpush1.msra.mxu0 0.0
    %1066 = vmatprep.subr.mxu0 0.0
    %1067 = vmatpush1.msra.mxu0 0.0
    %1068 = vmatprep.subr.mxu0 0.0
    %1069 = vmatpush1.msra.mxu0 0.0
    %1070 = vmatprep.subr.mxu0 0.0
    %1071 = vmatpush1.msra.mxu0 0.0
    %1072 = vmatprep.subr.mxu0 0.0
    %1073 = vmatpush1.msra.mxu0 0.0
    %1074 = vmatprep.subr.mxu0 0.0
    %1075 = vmatpush1.msra.mxu0 0.0
    %1076 = vmatprep.subr.mxu0 0.0
    %1077 = vmatpush1.msra.mxu0 0.0
    %1078 = vmatprep.subr.mxu0 0.0
    %1079 = vmatpush1.msra.mxu0 0.0
    %1080 = vmatprep.subr.mxu0 0.0
    %1081 = vmatpush1.msra.mxu0 0.0
    %1082 = vmatprep.subr.mxu0 0.0
    %1083 = vmatpush1.msra.mxu0 0.0
    %1084 = vmatprep.subr.mxu0 0.0
    %1085 = vmatpush1.msra.mxu0 0.0
    %1086 = vmatprep.subr.mxu0 0.0
    %1087 = vmatpush1.msra.mxu0 0.0
    %1088 = vmatprep.subr.mxu0 0.0
    %1089 = vmatpush1.msra.mxu0 0.0
    %1090 = vmatprep.subr.mxu0 0.0
    %1091 = vmatpush1.msra.mxu0 0.0
    %1092 = vmatprep.subr.mxu0 0.0
    %1093 = vmatpush1.msra.mxu0 0.0
    %1094 = vmatprep.subr.mxu0 0.0
    %1095 = vmatpush1.msra.mxu0 0.0
    %1096 = vmatprep.subr.mxu0 0.0
    %1097 = vmatpush1.msra.mxu0 0.0
    %1098 = vmatprep.subr.mxu0 0.0
    %1099 = vmatpush1.msra.mxu0 0.0
    %1100 = vmatprep.subr.mxu0 0.0
    %1101 = vmatpush1.msra.mxu0 0.0
    %1102 = vmatprep.subr.mxu0 0.0
    %1103 = vmatpush1.msra.mxu0 0.0
    %1104 = vmatprep.subr.mxu0 0.0
    %1105 = vmatpush1.msra.mxu0 0.0
    %1106 = vmatprep.subr.mxu0 0.0
    %1107 = vmatpush1.msra.mxu0 0.0
    %1108 = vmatprep.subr.mxu0 0.0
    %1109 = vmatpush1.msra.mxu0 0.0
    %1110 = vmatprep.mubr.f32.mxu0 0.0
    %1111 = vmatmul.mubr.f32.gmra.mrb[0].mxu0 %v1038
    %v1112 = vpop.f32.mrb[0].mxu0
    %v1113 = vadd.f32 %v1035, %v1112
    %v1114 = vpop.f32.mrb[0].mxu0
    %1115 = vmatprep.mubr.f32.mxu0 0.0
    %1116 = vmatmul.mubr.f32.gmra.mrb[0].mxu0 %v1041
    %v1117 = vpop.f32.mrb[0].mxu0
    %v1118 = vadd.f32 %v1035, %v1117
    %v1119 = vpop.f32.mrb[0].mxu0
    %1120 = vmatprep.mubr.f32.mxu0 0.0
    %1121 = vmatmul.mubr.f32.gmra.mrb[0].mxu0 %v1044
    %v1122 = vpop.f32.mrb[0].mxu0
    %v1123 = vadd.f32 %v1035, %v1122
    %v1124 = vpop.f32.mrb[0].mxu0
    %1125 = vdwg.mxu0
    %1129 = vrot.lane.b32.xlu0 %v1113, 32
    %v1130 = vpop.permute.xlu0 %1129
    %1131 = vrot.lane.b32.xlu0 %v1118, 32
    %v1132 = vpop.permute.xlu0 %1131
    %1133 = vrot.lane.b32.xlu0 %v1123, 32
    %v1134 = vpop.permute.xlu0 %1133
    %v1138 = vsel %vm141, %v642, %v1130
    %v1139 = vsel %vm141, %v643, %v1132
    %v1140 = vsel %vm141, %v644, %v1134
    %vm1141 = vcmask 523264
    %v1142 = vsel %vm1141, %v1138, 0.0
    %v1143 = vsel %vm1141, %v1139, 0.0
    %v1144 = vsel %vm1141, %v1140, 0.0
    %1145 = vst [vmem:[#allocation11] sm:$0xff] %v1142
    %1146 = vst [vmem:[#allocation11 + $0x8] sm:$0xff] %v1143
    %1147 = vst [vmem:[#allocation11 + $0x10] sm:$0xff] %v1144
    %v1148 = vld [vmem:[%s6] sm:$0xff]
    %v1149 = vld [vmem:[%s6 + $0x8] sm:$0xff]
    %v1150 = vld [vmem:[%s6 + $0x10] sm:$0xff]
    %v1151 = vld [vmem:[%s6 + $0x18] sm:$0xff]
    %1152 = vmatprep.subr.mxu0 0.0
    %1153 = vmatpush1.msra.mxu0 %v1148
    %1154 = vmatprep.subr.mxu0 0.0
    %1155 = vmatpush1.msra.mxu0 %v1149
    %1156 = vmatprep.subr.mxu0 0.0
    %1157 = vmatpush1.msra.mxu0 %v1150
    %1158 = vmatprep.subr.mxu0 0.0
    %1159 = vmatpush1.msra.mxu0 %v1151
    %1160 = vmatprep.subr.mxu0 0.0
    %1161 = vmatpush1.msra.mxu0 0.0
    %1162 = vmatprep.subr.mxu0 0.0
    %1163 = vmatpush1.msra.mxu0 0.0
    %1164 = vmatprep.subr.mxu0 0.0
    %1165 = vmatpush1.msra.mxu0 0.0
    %1166 = vmatprep.subr.mxu0 0.0
    %1167 = vmatpush1.msra.mxu0 0.0
    %1168 = vmatprep.subr.mxu0 0.0
    %1169 = vmatpush1.msra.mxu0 0.0
    %1170 = vmatprep.subr.mxu0 0.0
    %1171 = vmatpush1.msra.mxu0 0.0
    %1172 = vmatprep.subr.mxu0 0.0
    %1173 = vmatpush1.msra.mxu0 0.0
    %1174 = vmatprep.subr.mxu0 0.0
    %1175 = vmatpush1.msra.mxu0 0.0
    %1176 = vmatprep.subr.mxu0 0.0
    %1177 = vmatpush1.msra.mxu0 0.0
    %1178 = vmatprep.subr.mxu0 0.0
    %1179 = vmatpush1.msra.mxu0 0.0
    %1180 = vmatprep.subr.mxu0 0.0
    %1181 = vmatpush1.msra.mxu0 0.0
    %1182 = vmatprep.subr.mxu0 0.0
    %1183 = vmatpush1.msra.mxu0 0.0
    %1184 = vmatprep.subr.mxu0 0.0
    %1185 = vmatpush1.msra.mxu0 0.0
    %1186 = vmatprep.subr.mxu0 0.0
    %1187 = vmatpush1.msra.mxu0 0.0
    %1188 = vmatprep.subr.mxu0 0.0
    %1189 = vmatpush1.msra.mxu0 0.0
    %1190 = vmatprep.subr.mxu0 0.0
    %1191 = vmatpush1.msra.mxu0 0.0
    %1192 = vmatprep.subr.mxu0 0.0
    %1193 = vmatpush1.msra.mxu0 0.0
    %1194 = vmatprep.subr.mxu0 0.0
    %1195 = vmatpush1.msra.mxu0 0.0
    %1196 = vmatprep.subr.mxu0 0.0
    %1197 = vmatpush1.msra.mxu0 0.0
    %1198 = vmatprep.subr.mxu0 0.0
    %1199 = vmatpush1.msra.mxu0 0.0
    %1200 = vmatprep.subr.mxu0 0.0
    %1201 = vmatpush1.msra.mxu0 0.0
    %1202 = vmatprep.subr.mxu0 0.0
    %1203 = vmatpush1.msra.mxu0 0.0
    %1204 = vmatprep.subr.mxu0 0.0
    %1205 = vmatpush1.msra.mxu0 0.0
    %1206 = vmatprep.subr.mxu0 0.0
    %1207 = vmatpush1.msra.mxu0 0.0
    %1208 = vmatprep.subr.mxu0 0.0
    %1209 = vmatpush1.msra.mxu0 0.0
    %1210 = vmatprep.subr.mxu0 0.0
    %1211 = vmatpush1.msra.mxu0 0.0
    %1212 = vmatprep.subr.mxu0 0.0
    %1213 = vmatpush1.msra.mxu0 0.0
    %1214 = vmatprep.subr.mxu0 0.0
    %1215 = vmatpush1.msra.mxu0 0.0
    %1216 = vmatprep.mubr.f32.mxu0 0.0
    %1217 = vmatmul.mubr.f32.gmra.mrb[0].mxu0 %v737
    %v1218 = vpop.f32.mrb[0].mxu0
    %v1219 = vadd.f32 0.0, %v1218
    %v1220 = vpop.f32.mrb[0].mxu0
    %1221 = vdwg.mxu0
    %v1222 = vld [vmem:[%s15] sm:$0xff]
    %v1223 = vld [vmem:[%s15 + $0x8] sm:$0x3]
    %vm1224 = vcmask 80896
    %v1226 = vsel %vm1224, %v1219, 0
    %v1229 = vsel %vm1224, %v1222, 0
    %v1232 = vsel %vm1224, %v1223, 0
    %1234 = vmatprep.subr.mxu0 0.0
    %1235 = vmatpush1.xpose.msra.mxu0 %v1229
    %1236 = vmatprep.subr.mxu0 0.0
    %1237 = vmatpush1.xpose.msra.mxu0 %v1232
    %1238 = vmatprep.subr.mxu0 0.0
    %1239 = vmatpush1.xpose.msra.mxu0 0.0
    %1240 = vmatprep.subr.mxu0 0.0
    %1241 = vmatpush1.xpose.msra.mxu0 0.0
    %1242 = vmatprep.subr.mxu0 0.0
    %1243 = vmatpush1.xpose.msra.mxu0 0.0
    %1244 = vmatprep.subr.mxu0 0.0
    %1245 = vmatpush1.xpose.msra.mxu0 0.0
    %1246 = vmatprep.subr.mxu0 0.0
    %1247 = vmatpush1.xpose.msra.mxu0 0.0
    %1248 = vmatprep.subr.mxu0 0.0
    %1249 = vmatpush1.xpose.msra.mxu0 0.0
    %1250 = vmatprep.subr.mxu0 0.0
    %1251 = vmatpush1.xpose.msra.mxu0 0.0
    %1252 = vmatprep.subr.mxu0 0.0
    %1253 = vmatpush1.xpose.msra.mxu0 0.0
    %1254 = vmatprep.subr.mxu0 0.0
    %1255 = vmatpush1.xpose.msra.mxu0 0.0
    %1256 = vmatprep.subr.mxu0 0.0
    %1257 = vmatpush1.xpose.msra.mxu0 0.0
    %1258 = vmatprep.subr.mxu0 0.0
    %1259 = vmatpush1.xpose.msra.mxu0 0.0
    %1260 = vmatprep.subr.mxu0 0.0
    %1261 = vmatpush1.xpose.msra.mxu0 0.0
    %1262 = vmatprep.subr.mxu0 0.0
    %1263 = vmatpush1.xpose.msra.mxu0 0.0
    %1264 = vmatprep.subr.mxu0 0.0
    %1265 = vmatpush1.xpose.msra.mxu0 0.0
    %1266 = vmatprep.subr.mxu0 0.0
    %1267 = vmatpush1.xpose.msra.mxu0 0.0
    %1268 = vmatprep.subr.mxu0 0.0
    %1269 = vmatpush1.xpose.msra.mxu0 0.0
    %1270 = vmatprep.subr.mxu0 0.0
    %1271 = vmatpush1.xpose.msra.mxu0 0.0
    %1272 = vmatprep.subr.mxu0 0.0
    %1273 = vmatpush1.xpose.msra.mxu0 0.0
    %1274 = vmatprep.subr.mxu0 0.0
    %1275 = vmatpush1.xpose.msra.mxu0 0.0
    %1276 = vmatprep.subr.mxu0 0.0
    %1277 = vmatpush1.xpose.msra.mxu0 0.0
    %1278 = vmatprep.subr.mxu0 0.0
    %1279 = vmatpush1.xpose.msra.mxu0 0.0
    %1280 = vmatprep.subr.mxu0 0.0
    %1281 = vmatpush1.xpose.msra.mxu0 0.0
    %1282 = vmatprep.subr.mxu0 0.0
    %1283 = vmatpush1.xpose.msra.mxu0 0.0
    %1284 = vmatprep.subr.mxu0 0.0
    %1285 = vmatpush1.xpose.msra.mxu0 0.0
    %1286 = vmatprep.subr.mxu0 0.0
    %1287 = vmatpush1.xpose.msra.mxu0 0.0
    %1288 = vmatprep.subr.mxu0 0.0
    %1289 = vmatpush1.xpose.msra.mxu0 0.0
    %1290 = vmatprep.subr.mxu0 0.0
    %1291 = vmatpush1.xpose.msra.mxu0 0.0
    %1292 = vmatprep.subr.mxu0 0.0
    %1293 = vmatpush1.xpose.msra.mxu0 0.0
    %1294 = vmatprep.subr.mxu0 0.0
    %1295 = vmatpush1.xpose.msra.mxu0 0.0
    %1296 = vmatprep.subr.mxu0 0.0
    %1297 = vmatpush1.xpose.msra.mxu0 0.0
    %1298 = vmatprep.mubr.f32.mxu0 0.0
    %1299 = vmatmul.mubr.f32.gmra.mrb[0].mxu0 %v1226
    %v1300 = vpop.f32.mrb[0].mxu0
    %v1301 = vadd.f32 0.0, %v1300
    %v1302 = vpop.f32.mrb[0].mxu0
    %1303 = vdwg.mxu0
    %v1304 = vmul.f32 %v1219, %v1219
    %v1305 = vsel %vm1224, %v1304, 0.0
    %1306 = vadd.xlane.f32.xlu0 %v1305
    %v1307 = vpop.xlane.xlu0 %1306
    %v1308 = vld [vmem:[%s16] sm:$0x1]
    %v1310 = vlaneseq
    %v1311 = vshrl.u32 %v1310, 7
    %v1312 = vsub.s32 0, %v1311
    %v1313 = vrot.slane %v1308, %v1312
    %v1315 = vadd.f32 %v1307, %v1313
    %v1316 = vmul.f32 %v1301, 2.0
    %v1317 = vsub.f32 %v1315, %v1316
    %v1318 = vmax.f32 %v1317, 0.0
    %v1319 = vadd.f32 %v1318, 1.0
    %v1320 = vrcp.pop %v1319
    %v1321 = vmul.f32 1.0, %v1320
    %v1322 = vsel %vm1224, %v1321, 0.0
    %1323 = vadd.xlane.f32.xlu0 %v1322
    %v1324 = vpop.xlane.xlu0 %1323
    %v1325 = vrcp.pop %v1324
    %v1326 = vmul.f32 %v1321, %v1325
    %v1327 = vsel %vm1224, %v1219, -inf
    %1328 = vmax.xlane.f32.xlu0 %v1327
    %v1329 = vpop.xlane.xlu0 %1328
    %v1330 = vsub.f32 %v1219, %v1329
    %v1331 = vmul.f32 %v1330, 1.442695
    %v1332 = vpow.pop %v1331
    %v1333 = vsel %vm1224, %v1332, 0.0
    %1334 = vadd.xlane.f32.xlu0 %v1333
    %v1335 = vpop.xlane.xlu0 %1334
    %v1336 = vrcp.pop %v1335
    %v1337 = vmul.f32 %v1332, %v1336
    %1339 = vrot.lane.b32.xlu0 %v1337, 10
    %v1340 = vpop.permute.xlu0 %1339
    %v1342 = vsel %vm1224, %v1326, %v1340
    %vm1343 = vcmask 162816
    %v1344 = vsel %vm1343, %v1342, 0.0
    %1345 = vst [vmem:[#allocation13] sm:$0xff] %v1344
    // Predicated region
    $region86: #{tpu_custom_call.1} parent=1 // pred_check
      _
    $region87: #{tpu_custom_call.1} parent=1 // pred_check_branch
      %1347 = sbr.rel (0) target = $region89
    $region88: #{tpu_custom_call.1} parent=1 // pred_region
      %s1349 = ssub.s32 384, 384
      %1350 = vsyncadd [#allocation4], %s1349
      %s1351 = sshll.u32 [#allocation10], 4
      %s1352 = int_to_ptr.vmem [resolvable:$true] %s1351
      %1357 = dma.vmem_to_hbm [thread:$0]  %s1352, 384, %s17, [#allocation4], 128, 128, 8
    $region89: #{tpu_custom_call.1} parent=1 // pred_fallthru
      _
    // Predicated region
    $region90: #{tpu_custom_call.1} parent=1 // pred_check
      _
    $region91: #{tpu_custom_call.1} parent=1 // pred_check_branch
      %1359 = sbr.rel (0) target = $region93
    $region92: #{tpu_custom_call.1} parent=1 // pred_region
      %s1361 = ssub.s32 384, 384
      %1362 = vsyncadd [#allocation12], %s1361
      %s1363 = sshll.u32 [#allocation11], 4
      %s1364 = int_to_ptr.vmem [resolvable:$true] %s1363
      %1369 = dma.vmem_to_hbm [thread:$0]  %s1364, 384, %s18, [#allocation12], 128, 128, 8
    $region93: #{tpu_custom_call.1} parent=1 // pred_fallthru
      _
    // Predicated region
    $region94: #{tpu_custom_call.1} parent=1 // pred_check
      _
    $region95: #{tpu_custom_call.1} parent=1 // pred_check_branch
      %1371 = sbr.rel (0) target = $region97
    $region96: #{tpu_custom_call.1} parent=1 // pred_region
      %s1373 = ssub.s32 128, 128
      %1374 = vsyncadd [#allocation12], %s1373
      %s1376 = sshll.u32 [#allocation13], 4
      %s1377 = int_to_ptr.vmem [resolvable:$true] %s1376
      %1379 = dma.vmem_to_hbm [thread:$0]  %s1377, 128, %s19, [#allocation12]
    $region97: #{tpu_custom_call.1} parent=1 // pred_fallthru
      _
    // Predicated region
    $region98: #{tpu_custom_call.1} parent=1 // pred_check
      _
    $region99: #{tpu_custom_call.1} parent=1 // pred_check_branch
      %1381 = sbr.rel (0) target = $region101
    $region100: #{tpu_custom_call.1} parent=1 // pred_region
      %1382 = dma.done [#allocation4], 384
    $region101: #{tpu_custom_call.1} parent=1 // pred_fallthru
      _
    // Predicated region
    $region102: #{tpu_custom_call.1} parent=1 // pred_check
      _
    $region103: #{tpu_custom_call.1} parent=1 // pred_check_branch
      %1384 = sbr.rel (0) target = $region105
    $region104: #{tpu_custom_call.1} parent=1 // pred_region
      %1385 = dma.done [#allocation12], 384
    $region105: #{tpu_custom_call.1} parent=1 // pred_fallthru
      _
    // Predicated region
    $region106: #{tpu_custom_call.1} parent=1 // pred_check
      _
    $region107: #{tpu_custom_call.1} parent=1 // pred_check_branch
      %1387 = sbr.rel (0) target = $region109
    $region108: #{tpu_custom_call.1} parent=1 // pred_region
      %1388 = dma.done [#allocation12], 128
    $region109: #{tpu_custom_call.1} parent=1 // pred_fallthru
      _
    %1389 = vsyncpa [#allocation3], 1
    %1390 = vsyncpa [#allocation6], 1
    %1391 = vsyncpa [#allocation9], 1
    %1392 = vsyncpa [#allocation4], 1
    %1393 = vsyncpa [#allocation12], 1

</llo_original>
